<compile_context>
chip_gen: v7x
topology: tpu7x:2x2x1
jax: 0.10.0
libtpu: 0.0.40
codegen_flags: <defaults>
</compile_context>

<pallas_src>
import functools

import jax
import jax.numpy as jnp
from jax.experimental import pallas as pl
from jax.experimental.pallas import tpu as pltpu


_INV_SQRT2 = 0.7071067811865476


def _erf_poly(x):
    """erf via Abramowitz & Stegun 7.1.26 (max abs error 1.5e-7)."""
    a1 = jnp.float32(0.254829592)
    a2 = jnp.float32(-0.284496736)
    a3 = jnp.float32(1.421413741)
    a4 = jnp.float32(-1.453152027)
    a5 = jnp.float32(1.061405429)
    p = jnp.float32(0.3275911)
    ax = jnp.abs(x)
    t = 1.0 / (1.0 + p * ax)
    poly = ((((a5 * t + a4) * t + a3) * t + a2) * t + a1) * t
    y = 1.0 - poly * jnp.exp(-(ax * ax))
    return jnp.where(x < 0, -y, y)


def _gelu(x):
    # Exact-erf GELU (torch.nn.functional.gelu default), erf via the 1.5e-7 polynomial.
    return 0.5 * x * (1.0 + _erf_poly(x * jnp.float32(_INV_SQRT2)))


def _gelu_ref(x):
    # Reference activation (outside the kernel), true erf.
    return 0.5 * x * (1.0 + jax.scipy.special.erf(x * jnp.float32(_INV_SQRT2)))


def _mlp_kernel(num_layer, d_in, d_out,
                x_ref, w_in_t_ref, b_in_t_ref, w_h_t_ref, b_h_t_ref,
                w_out_ref, b_out_t_ref, o_ref):
    # Everything is (features, batch_tile); the lane dim (batch tile, multiple of 128)
    # stays dense through the whole network.
    x_t = x_ref[...]                    # (d_in, tile_m)
    w_in_t = w_in_t_ref[...]            # (d_hidden, d_in)

    # ---- input layer: K = d_in is tiny (2 for the (t, x) Burgers inputs), so use
    # d_in broadcast multiply-adds on the VPU instead of a degenerate MXU matmul.
    if d_in <= 8:
        h = w_in_t[:, 0:1] * x_t[0:1, :]
        for k in range(1, d_in):
            h = h + w_in_t[:, k:k + 1] * x_t[k:k + 1, :]
        h = h + b_in_t_ref[...]
    else:
        h = jnp.dot(w_in_t, x_t, preferred_element_type=jnp.float32) + b_in_t_ref[...]
    h = _gelu(h)                        # (d_hidden, tile_m)

    # ---- hidden layers: (d_hidden, d_hidden) @ (d_hidden, tile_m); the MXU output
    # dimension (tile_m) is lane-dense.
    def layer(w, b, hh):
        return _gelu(jnp.dot(w, hh, preferred_element_type=jnp.float32) + b)

    if num_layer <= 4:
        for l in range(num_layer):      # short fixed trip count: static unroll
            h = layer(w_h_t_ref[l], b_h_t_ref[l], h)
    else:
        h = jax.lax.fori_loop(
            0, num_layer,
            lambda l, hh: layer(w_h_t_ref[l], b_h_t_ref[l], hh), h)

    # ---- output layer: d_out == 1 (scalar u(t, x)) -> weighted multiply (VPU) +
    # sublane reduction (XLU) instead of an M=1 matmul that would idle the MXU.
    if d_out == 1:
        out_t = jnp.sum(w_out_ref[...] * h, axis=0, keepdims=True)      # (1, tile_m)
    else:
        out_t = jax.lax.dot_general(
            w_out_ref[...], h,
            dimension_numbers=(((0,), (0,)), ((), ())),
            preferred_element_type=jnp.float32)                         # (d_out, tile_m)
    o_ref[...] = out_t + b_out_t_ref[...]


def prepare_params(params):
    """One-time layout prep (call once, not per forward): transpose into the
    (features, *) kernel layout so the forward wrapper does no per-call weight ops."""
    w_in, b_in, w_h, b_h, w_out, b_out = params
    return (w_in.T,                              # (d_hidden, d_in)
            b_in.T,                              # (d_hidden, 1)
            jnp.transpose(w_h, (0, 2, 1)),       # (L, d_hidden, d_hidden), per-layer W^T
            jnp.transpose(b_h, (0, 2, 1)),       # (L, d_hidden, 1)
            w_out,                               # (d_hidden, d_out) -- used column-wise
            b_out.T)                             # (d_out, 1)


def mlp_forward(x, prepared_params, *, tile_m=512):
    """x: (N, d_in) float32 -> (N, d_out) float32.  Arbitrary N (zero-padded to the tile)."""
    w_in_t, b_in_t, w_h_t, b_h_t, w_out, b_out_t = prepared_params
    N, d_in = x.shape
    d_hidden = w_in_t.shape[0]
    d_out = w_out.shape[1]
    num_layer = w_h_t.shape[0]

    # Clamp the tile to the 128-aligned problem size, then pad the batch axis.
    tile = min(tile_m, pl.cdiv(N, 128) * 128)
    n_pad = pl.cdiv(N, tile) * tile
    x_t = x.T                                    # (d_in, N): tiny, lane-dense tile loads
    if n_pad != N:
        x_t = jnp.pad(x_t, ((0, 0), (0, n_pad - N)))
    grid = (n_pad // tile,)

    kernel = functools.partial(_mlp_kernel, num_layer, d_in, d_out)

    # NOTE(scaling): all hidden weights stay VMEM-resident (and double-buffered by the
    # pipeline).  At d_hidden=64 that's ~17 KiB; if the net is scaled up (large
    # d_hidden / num_layer), add a layer grid axis or raise vmem_limit_bytes so the
    # resident weight block still fits v7x's 64 MiB VMEM.
    out_t = pl.pallas_call(
        kernel,
        out_shape=jax.ShapeDtypeStruct((d_out, n_pad), jnp.float32),
        grid_spec=pltpu.PrefetchScalarGridSpec(
            num_scalar_prefetch=0,
            grid=grid,
            in_specs=[
                pl.BlockSpec((d_in, tile), lambda i: (0, i)),                  # x^T tile
                pl.BlockSpec((d_hidden, d_in), lambda i: (0, 0)),              # w_in^T
                pl.BlockSpec((d_hidden, 1), lambda i: (0, 0)),                 # b_in^T
                pl.BlockSpec((num_layer, d_hidden, d_hidden),
                             lambda i: (0, 0, 0)),                             # stacked hidden W^T
                pl.BlockSpec((num_layer, d_hidden, 1), lambda i: (0, 0, 0)),   # stacked hidden b^T
                pl.BlockSpec((d_hidden, d_out), lambda i: (0, 0)),             # w_out
                pl.BlockSpec((d_out, 1), lambda i: (0, 0)),                    # b_out^T
            ],
            out_specs=pl.BlockSpec((d_out, tile), lambda i: (0, i)),           # lane-dense stores
        ),
        compiler_params=pltpu.CompilerParams(
            dimension_semantics=("parallel",)),
    )(x_t, w_in_t, b_in_t, w_h_t, b_h_t, w_out, b_out_t)

    return out_t[:, :N].T                        # back to (N, d_out)


def init_params(key, d_in, d_out, d_hidden, num_layer):
    """PyTorch nn.Linear-style uniform(-1/sqrt(fan_in), 1/sqrt(fan_in)) init, deterministic."""
    k_in, k_h, k_out = jax.random.split(key, 3)

    def lin(k, fan_in, fan_out):
        kw, kb = jax.random.split(k)
        bound = 1.0 / jnp.sqrt(jnp.float32(fan_in))
        w = jax.random.uniform(kw, (fan_in, fan_out), jnp.float32, -bound, bound)
        b = jax.random.uniform(kb, (1, fan_out), jnp.float32, -bound, bound)
        return w, b

    w_in, b_in = lin(k_in, d_in, d_hidden)
    kh = jax.random.split(k_h, num_layer)
    wbs = [lin(kh[l], d_hidden, d_hidden) for l in range(num_layer)]
    w_h = jnp.stack([w for w, _ in wbs])
    b_h = jnp.stack([b for _, b in wbs])
    w_out, b_out = lin(k_out, d_hidden, d_out)
    return w_in, b_in, w_h, b_h, w_out, b_out


def mlp_reference(x, params, activation):
    w_in, b_in, w_h, b_h, w_out, b_out = params
    h = activation(x @ w_in + b_in)
    for l in range(w_h.shape[0]):
        h = activation(h @ w_h[l] + b_h[l])
    return h @ w_out + b_out


if __name__ == "__main__":
    # Burgers 1-D PINN: inputs are (t, x) coordinate pairs -> scalar u(t, x).
    d_in, d_out, d_hidden, num_layer = 2, 1, 64, 1

    key = jax.random.PRNGKey(0)
    k_x, k_p, k_x2 = jax.random.split(key, 3)
    params = init_params(k_p, d_in, d_out, d_hidden, num_layer)
    prepared = prepare_params(params)            # one-time layout prep

    # Main case: N=1024 with tile_m=512 -> grid=2 (one step per v7x TensorCore).
    N = 1024
    x = jax.random.normal(k_x, (N, d_in), jnp.float32)
    out = jax.block_until_ready(mlp_forward(x, prepared))
    assert out.shape == (N, d_out)
    ref = mlp_reference(x, params, _gelu_ref)
    assert jnp.allclose(out, ref, atol=1e-4, rtol=1e-4), "mismatch vs exact-GELU reference"

    # Ragged case: batch not a multiple of the tile exercises the padding path.
    N2 = 200
    x2 = jax.random.normal(k_x2, (N2, d_in), jnp.float32)
    out2 = jax.block_until_ready(mlp_forward(x2, prepared))
    assert out2.shape == (N2, d_out)
    ref2 = mlp_reference(x2, params, _gelu_ref)
    assert jnp.allclose(out2, ref2, atol=1e-4, rtol=1e-4), "ragged-batch mismatch"

    print("KERNEL_OK")
</pallas_src>

<mosaic_0001>
module attributes {stable_mosaic.version = 11 : i64} {
  func.func @_mlp_kernel(%arg0: i32, %arg1: memref<2x512xf32, #tpu.memory_space<vmem>>, %arg2: memref<64x2xf32, #tpu.memory_space<vmem>>, %arg3: memref<64x1xf32, #tpu.memory_space<vmem>>, %arg4: memref<1x64x64xf32, #tpu.memory_space<vmem>>, %arg5: memref<1x64x1xf32, #tpu.memory_space<vmem>>, %arg6: memref<64x1xf32, #tpu.memory_space<vmem>>, %arg7: memref<1x1xf32, #tpu.memory_space<vmem>>, %arg8: memref<1x512xf32, #tpu.memory_space<vmem>>) attributes {dimension_semantics = [#tpu.dimension_semantics<parallel>], iteration_bounds = array<i64: 2>, scalar_prefetch = 0 : i64, scratch_operands = 0 : i64, tpu.core_type = #tpu.core_type<tc>, window_params = [{transform_indices = @transform_0, window_bounds = array<i64: 2, 512>}, {pipeline_mode = #tpu.pipeline_mode<synchronous>, transform_indices = @transform_1, window_bounds = array<i64: 64, 2>}, {pipeline_mode = #tpu.pipeline_mode<synchronous>, transform_indices = @transform_2, window_bounds = array<i64: 64, 1>}, {pipeline_mode = #tpu.pipeline_mode<synchronous>, transform_indices = @transform_3, window_bounds = array<i64: 1, 64, 64>}, {pipeline_mode = #tpu.pipeline_mode<synchronous>, transform_indices = @transform_4, window_bounds = array<i64: 1, 64, 1>}, {pipeline_mode = #tpu.pipeline_mode<synchronous>, transform_indices = @transform_5, window_bounds = array<i64: 64, 1>}, {pipeline_mode = #tpu.pipeline_mode<synchronous>, transform_indices = @transform_6, window_bounds = array<i64: 1, 1>}, {transform_indices = @transform_7, window_bounds = array<i64: 1, 512>}]} {
    %c0 = arith.constant 0 : index
    %c0_0 = arith.constant 0 : index
    %0 = vector.load %arg1[%c0, %c0_0] : memref<2x512xf32, #tpu.memory_space<vmem>>, vector<2x512xf32>
    %c0_1 = arith.constant 0 : index
    %c0_2 = arith.constant 0 : index
    %1 = vector.load %arg2[%c0_1, %c0_2] : memref<64x2xf32, #tpu.memory_space<vmem>>, vector<64x2xf32>
    %2 = vector.extract_strided_slice %1 {offsets = [0, 0], sizes = [64, 1], strides = [1, 1]} : vector<64x2xf32> to vector<64x1xf32>
    %3 = vector.extract_strided_slice %0 {offsets = [0, 0], sizes = [1, 512], strides = [1, 1]} : vector<2x512xf32> to vector<1x512xf32>
    %4 = vector.broadcast %2 : vector<64x1xf32> to vector<64x512xf32>
    %5 = vector.broadcast %3 : vector<1x512xf32> to vector<64x512xf32>
    %6 = arith.mulf %4, %5 : vector<64x512xf32>
    %7 = vector.extract_strided_slice %1 {offsets = [0, 1], sizes = [64, 1], strides = [1, 1]} : vector<64x2xf32> to vector<64x1xf32>
    %8 = vector.extract_strided_slice %0 {offsets = [1, 0], sizes = [1, 512], strides = [1, 1]} : vector<2x512xf32> to vector<1x512xf32>
    %9 = vector.broadcast %7 : vector<64x1xf32> to vector<64x512xf32>
    %10 = vector.broadcast %8 : vector<1x512xf32> to vector<64x512xf32>
    %11 = arith.mulf %9, %10 : vector<64x512xf32>
    %12 = arith.addf %6, %11 : vector<64x512xf32>
    %c0_3 = arith.constant 0 : index
    %c0_4 = arith.constant 0 : index
    %13 = vector.load %arg3[%c0_3, %c0_4] : memref<64x1xf32, #tpu.memory_space<vmem>>, vector<64x1xf32>
    %14 = vector.broadcast %13 : vector<64x1xf32> to vector<64x512xf32>
    %15 = arith.addf %12, %14 : vector<64x512xf32>
    %cst = arith.constant 5.000000e-01 : f32
    %16 = vector.broadcast %cst : f32 to vector<64x512xf32>
    %17 = arith.mulf %16, %15 : vector<64x512xf32>
    %cst_5 = arith.constant 0.707106769 : f32
    %18 = vector.broadcast %cst_5 : f32 to vector<64x512xf32>
    %19 = arith.mulf %15, %18 : vector<64x512xf32>
    %20 = math.absf %19 : vector<64x512xf32>
    %cst_6 = arith.constant 0.327591091 : f32
    %21 = vector.broadcast %cst_6 : f32 to vector<64x512xf32>
    %22 = arith.mulf %21, %20 : vector<64x512xf32>
    %cst_7 = arith.constant 1.000000e+00 : f32
    %23 = vector.broadcast %cst_7 : f32 to vector<64x512xf32>
    %24 = arith.addf %23, %22 : vector<64x512xf32>
    %cst_8 = arith.constant 1.000000e+00 : f32
    %25 = vector.broadcast %cst_8 : f32 to vector<64x512xf32>
    %26 = arith.divf %25, %24 : vector<64x512xf32>
    %cst_9 = arith.constant 1.06140542 : f32
    %27 = vector.broadcast %cst_9 : f32 to vector<64x512xf32>
    %28 = arith.mulf %27, %26 : vector<64x512xf32>
    %cst_10 = arith.constant -1.45315206 : f32
    %29 = vector.broadcast %cst_10 : f32 to vector<64x512xf32>
    %30 = arith.addf %28, %29 : vector<64x512xf32>
    %31 = arith.mulf %30, %26 : vector<64x512xf32>
    %cst_11 = arith.constant 1.42141378 : f32
    %32 = vector.broadcast %cst_11 : f32 to vector<64x512xf32>
    %33 = arith.addf %31, %32 : vector<64x512xf32>
    %34 = arith.mulf %33, %26 : vector<64x512xf32>
    %cst_12 = arith.constant -0.284496725 : f32
    %35 = vector.broadcast %cst_12 : f32 to vector<64x512xf32>
    %36 = arith.addf %34, %35 : vector<64x512xf32>
    %37 = arith.mulf %36, %26 : vector<64x512xf32>
    %cst_13 = arith.constant 0.254829586 : f32
    %38 = vector.broadcast %cst_13 : f32 to vector<64x512xf32>
    %39 = arith.addf %37, %38 : vector<64x512xf32>
    %40 = arith.mulf %39, %26 : vector<64x512xf32>
    %41 = arith.mulf %20, %20 : vector<64x512xf32>
    %cst_14 = arith.constant 0.000000e+00 : f32
    %42 = vector.broadcast %cst_14 : f32 to vector<64x512xf32>
    %43 = arith.subf %42, %41 : vector<64x512xf32>
    %44 = math.exp %43 : vector<64x512xf32>
    %45 = arith.mulf %40, %44 : vector<64x512xf32>
    %cst_15 = arith.constant 1.000000e+00 : f32
    %46 = vector.broadcast %cst_15 : f32 to vector<64x512xf32>
    %47 = arith.subf %46, %45 : vector<64x512xf32>
    %cst_16 = arith.constant 0.000000e+00 : f32
    %48 = vector.broadcast %cst_16 : f32 to vector<64x512xf32>
    %49 = arith.cmpf olt, %19, %48 : vector<64x512xf32>
    %cst_17 = arith.constant 0.000000e+00 : f32
    %50 = vector.broadcast %cst_17 : f32 to vector<64x512xf32>
    %51 = arith.subf %50, %47 : vector<64x512xf32>
    %52 = arith.select %49, %51, %47 : vector<64x512xi1>, vector<64x512xf32>
    %cst_18 = arith.constant 1.000000e+00 : f32
    %53 = vector.broadcast %cst_18 : f32 to vector<64x512xf32>
    %54 = arith.addf %53, %52 : vector<64x512xf32>
    %55 = arith.mulf %17, %54 : vector<64x512xf32>
    %c0_19 = arith.constant 0 : index
    %c0_20 = arith.constant 0 : index
    %c0_21 = arith.constant 0 : index
    %56 = vector.load %arg4[%c0_19, %c0_20, %c0_21] : memref<1x64x64xf32, #tpu.memory_space<vmem>>, vector<1x64x64xf32>
    %57 = vector.shape_cast %56 : vector<1x64x64xf32> to vector<64x64xf32>
    %c0_22 = arith.constant 0 : index
    %c0_23 = arith.constant 0 : index
    %c0_24 = arith.constant 0 : index
    %58 = vector.load %arg5[%c0_22, %c0_23, %c0_24] : memref<1x64x1xf32, #tpu.memory_space<vmem>>, vector<1x64x1xf32>
    %59 = vector.shape_cast %58 : vector<1x64x1xf32> to vector<64x1xf32>
    %cst_25 = arith.constant dense<0.000000e+00> : vector<64x512xf32>
    %60 = tpu.matmul %57, %55, %cst_25 {dimension_numbers = #tpu.dot_dimension_numbers<[1], [0], [0], [1], [0, 0, 1, 1], [], []>} : vector<64x64xf32>, vector<64x512xf32>, vector<64x512xf32> -> vector<64x512xf32>
    %61 = vector.broadcast %59 : vector<64x1xf32> to vector<64x512xf32>
    %62 = arith.addf %60, %61 : vector<64x512xf32>
    %cst_26 = arith.constant 5.000000e-01 : f32
    %63 = vector.broadcast %cst_26 : f32 to vector<64x512xf32>
    %64 = arith.mulf %63, %62 : vector<64x512xf32>
    %cst_27 = arith.constant 0.707106769 : f32
    %65 = vector.broadcast %cst_27 : f32 to vector<64x512xf32>
    %66 = arith.mulf %62, %65 : vector<64x512xf32>
    %67 = math.absf %66 : vector<64x512xf32>
    %cst_28 = arith.constant 0.327591091 : f32
    %68 = vector.broadcast %cst_28 : f32 to vector<64x512xf32>
    %69 = arith.mulf %68, %67 : vector<64x512xf32>
    %cst_29 = arith.constant 1.000000e+00 : f32
    %70 = vector.broadcast %cst_29 : f32 to vector<64x512xf32>
    %71 = arith.addf %70, %69 : vector<64x512xf32>
    %cst_30 = arith.constant 1.000000e+00 : f32
    %72 = vector.broadcast %cst_30 : f32 to vector<64x512xf32>
    %73 = arith.divf %72, %71 : vector<64x512xf32>
    %cst_31 = arith.constant 1.06140542 : f32
    %74 = vector.broadcast %cst_31 : f32 to vector<64x512xf32>
    %75 = arith.mulf %74, %73 : vector<64x512xf32>
    %cst_32 = arith.constant -1.45315206 : f32
    %76 = vector.broadcast %cst_32 : f32 to vector<64x512xf32>
    %77 = arith.addf %75, %76 : vector<64x512xf32>
    %78 = arith.mulf %77, %73 : vector<64x512xf32>
    %cst_33 = arith.constant 1.42141378 : f32
    %79 = vector.broadcast %cst_33 : f32 to vector<64x512xf32>
    %80 = arith.addf %78, %79 : vector<64x512xf32>
    %81 = arith.mulf %80, %73 : vector<64x512xf32>
    %cst_34 = arith.constant -0.284496725 : f32
    %82 = vector.broadcast %cst_34 : f32 to vector<64x512xf32>
    %83 = arith.addf %81, %82 : vector<64x512xf32>
    %84 = arith.mulf %83, %73 : vector<64x512xf32>
    %cst_35 = arith.constant 0.254829586 : f32
    %85 = vector.broadcast %cst_35 : f32 to vector<64x512xf32>
    %86 = arith.addf %84, %85 : vector<64x512xf32>
    %87 = arith.mulf %86, %73 : vector<64x512xf32>
    %88 = arith.mulf %67, %67 : vector<64x512xf32>
    %cst_36 = arith.constant 0.000000e+00 : f32
    %89 = vector.broadcast %cst_36 : f32 to vector<64x512xf32>
    %90 = arith.subf %89, %88 : vector<64x512xf32>
    %91 = math.exp %90 : vector<64x512xf32>
    %92 = arith.mulf %87, %91 : vector<64x512xf32>
    %cst_37 = arith.constant 1.000000e+00 : f32
    %93 = vector.broadcast %cst_37 : f32 to vector<64x512xf32>
    %94 = arith.subf %93, %92 : vector<64x512xf32>
    %cst_38 = arith.constant 0.000000e+00 : f32
    %95 = vector.broadcast %cst_38 : f32 to vector<64x512xf32>
    %96 = arith.cmpf olt, %66, %95 : vector<64x512xf32>
    %cst_39 = arith.constant 0.000000e+00 : f32
    %97 = vector.broadcast %cst_39 : f32 to vector<64x512xf32>
    %98 = arith.subf %97, %94 : vector<64x512xf32>
    %99 = arith.select %96, %98, %94 : vector<64x512xi1>, vector<64x512xf32>
    %cst_40 = arith.constant 1.000000e+00 : f32
    %100 = vector.broadcast %cst_40 : f32 to vector<64x512xf32>
    %101 = arith.addf %100, %99 : vector<64x512xf32>
    %102 = arith.mulf %64, %101 : vector<64x512xf32>
    %c0_41 = arith.constant 0 : index
    %c0_42 = arith.constant 0 : index
    %103 = vector.load %arg6[%c0_41, %c0_42] : memref<64x1xf32, #tpu.memory_space<vmem>>, vector<64x1xf32>
    %104 = vector.broadcast %103 : vector<64x1xf32> to vector<64x512xf32>
    %105 = arith.mulf %104, %102 : vector<64x512xf32>
    %cst_43 = arith.constant dense<0.000000e+00> : vector<512xf32>
    %106 = vector.multi_reduction <add>, %105, %cst_43 [0] : vector<64x512xf32> to vector<512xf32>
    %107 = vector.shape_cast %106 : vector<512xf32> to vector<1x512xf32>
    %c0_44 = arith.constant 0 : index
    %c0_45 = arith.constant 0 : index
    %108 = vector.load %arg7[%c0_44, %c0_45] : memref<1x1xf32, #tpu.memory_space<vmem>>, vector<1x1xf32>
    %109 = vector.broadcast %108 : vector<1x1xf32> to vector<1x512xf32>
    %110 = arith.addf %107, %109 : vector<1x512xf32>
    %c0_46 = arith.constant 0 : index
    %c0_47 = arith.constant 0 : index
    %111 = vector.load %arg8[%c0_46, %c0_47] : memref<1x512xf32, #tpu.memory_space<vmem>>, vector<1x512xf32>
    tpu.vector_store %arg8[%c0_46, %c0_47], %110 {strides = array<i32>} : memref<1x512xf32, #tpu.memory_space<vmem>>, vector<1x512xf32>,
    return
  }
  func.func @transform_0(%arg0: i32) -> (i32, i32) {
    %c0_i32 = arith.constant 0 : i32
    %c0_i32_0 = arith.constant 0 : i32
    return %c0_i32, %arg0 : i32, i32
  }
  func.func @transform_1(%arg0: i32) -> (i32, i32) {
    %c0_i32 = arith.constant 0 : i32
    %c0_i32_0 = arith.constant 0 : i32
    %c0_i32_1 = arith.constant 0 : i32
    return %c0_i32, %c0_i32_0 : i32, i32
  }
  func.func @transform_2(%arg0: i32) -> (i32, i32) {
    %c0_i32 = arith.constant 0 : i32
    %c0_i32_0 = arith.constant 0 : i32
    %c0_i32_1 = arith.constant 0 : i32
    return %c0_i32, %c0_i32_0 : i32, i32
  }
  func.func @transform_3(%arg0: i32) -> (i32, i32, i32) {
    %c0_i32 = arith.constant 0 : i32
    %c0_i32_0 = arith.constant 0 : i32
    %c0_i32_1 = arith.constant 0 : i32
    %c0_i32_2 = arith.constant 0 : i32
    return %c0_i32, %c0_i32_0, %c0_i32_1 : i32, i32, i32
  }
  func.func @transform_4(%arg0: i32) -> (i32, i32, i32) {
    %c0_i32 = arith.constant 0 : i32
    %c0_i32_0 = arith.constant 0 : i32
    %c0_i32_1 = arith.constant 0 : i32
    %c0_i32_2 = arith.constant 0 : i32
    return %c0_i32, %c0_i32_0, %c0_i32_1 : i32, i32, i32
  }
  func.func @transform_5(%arg0: i32) -> (i32, i32) {
    %c0_i32 = arith.constant 0 : i32
    %c0_i32_0 = arith.constant 0 : i32
    %c0_i32_1 = arith.constant 0 : i32
    return %c0_i32, %c0_i32_0 : i32, i32
  }
  func.func @transform_6(%arg0: i32) -> (i32, i32) {
    %c0_i32 = arith.constant 0 : i32
    %c0_i32_0 = arith.constant 0 : i32
    %c0_i32_1 = arith.constant 0 : i32
    return %c0_i32, %c0_i32_0 : i32, i32
  }
  func.func @transform_7(%arg0: i32) -> (i32, i32) {
    %c0_i32 = arith.constant 0 : i32
    %c0_i32_0 = arith.constant 0 : i32
    return %c0_i32, %arg0 : i32, i32
  }
}

</mosaic_0001>

<llo_original>
// kernel: tpu_custom_call.1
$region0: #{tpu_custom_call.1}
  #allocation0 [shape = 'u32[]', space=smem, size = 0x4, offset = 0x4, fixed_abs, tag = 'smem constant byte address 0x4 - core index']
  #allocation1 [shape = 'u32[144,128]{1,0:T(1,128)}', space=vmem, size = 0x12000, scoped, tag = 'internal scratch']
  #allocation2 [shape = 'f32[1,1]{1,0:T(1,128)S(1)}', space=vmem, size = 0x200, scoped, tag = 'scoped memory for tpu_custom_call.1']
  %s0 = inlined_call_operand.vmem [shape: f32[2,1024], index: 0, kind: input, shape index: {}]
  %s1 = inlined_call_operand.vmem [shape: f32[64,2], index: 1, kind: input, shape index: {}]
  %s2 = inlined_call_operand.vmem [shape: f32[64,1], index: 2, kind: input, shape index: {}]
  %s3 = inlined_call_operand.vmem [shape: f32[1,64,64], index: 3, kind: input, shape index: {}]
  %s4 = inlined_call_operand.vmem [shape: f32[1,64,1], index: 4, kind: input, shape index: {}]
  %s5 = inlined_call_operand.vmem [shape: f32[64,1], index: 5, kind: input, shape index: {}]
  %s6 = inlined_call_operand.<no memory space> [shape: f32[1,1], index: 6, kind: input, shape index: {}]
  %s7 = inlined_call_operand.hbm [shape: f32[1,1024], index: 7, kind: output, shape index: {}]
  %s8 = sld [smem:[#allocation0]]
  $region61: #{tpu_custom_call.1} parent=0
    _
  %s10 = ssub.s32 1, %s8
  %s11 = scalar_select 0, %s10, %s8
  %v12 = vstv %s6
  %13 = vst [vmem:[#allocation2] sm:$0x1] %v12
  $region1: #{tpu_custom_call.1} parent=0
    #allocation3 [shape = 'u8[4096]{0}', space=vmem, size = 0x1000, scoped, tag = 'output window, operand 0']
    #allocation4 [shape = 's32[2]{0}', space=sflag, size = 0x8, scoped, tag = 'scoped memory for tpu_custom_call.1']
    %14 = vsyncpa [#allocation4], 0
    %s15 = scalar_lea.sflag [#allocation4], 1
    %16 = vsyncpa %s15, 0
    loop: start=0, step=1, limit=4
    $region2: #{tpu_custom_call.1} parent=1 // loop_pre_header
      _
    $region3: #{tpu_custom_call.1} parent=1 // loop_header
      %s18 = sphi 0, %s22
      %p19 = scmp.ge.s32.totalorder %s18, 4
      %s28 = sphi 0, %s30
      %s31 = sphi 0, %s28
      %s32 = sphi 0, %s31
      %s48 = sphi 0, %s32
      %s52 = sphi 0, %s52
      %s54 = sphi 0, %s52
      %s55 = sphi 0, %s54
      %s69 = sphi 0, %s55
      %s73 = sphi 0, %s73
      %s75 = sphi 0, %s73
      %s76 = sphi 0, %s75
      %s90 = sphi 0, %s76
      %s94 = sphi 0, %s94
      %s96 = sphi 0, %s94
      %s97 = sphi 0, %s96
      %s111 = sphi 0, %s97
      %s115 = sphi 0, %s115
      %s117 = sphi 0, %s115
      %s118 = sphi 0, %s117
      %s132 = sphi 0, %s118
      %s136 = sphi 0, %s136
      %s138 = sphi 0, %s136
      %s139 = sphi 0, %s138
      %s153 = sphi 0, %s139
      %s157 = sphi 0, %s157
      %s159 = sphi 0, %s157
      %s160 = sphi 0, %s159
      %s174 = sphi 0, %s160
      %s180 = sphi 0, %s182
      %s183 = sphi 0, %s180
      %s184 = sphi 0, %s183
      %s200 = sphi 0, %s184
    $region4: #{tpu_custom_call.1} parent=1 // loop_header_branch
      %21 = sbr.rel (%p19) target = $region8
    $region5: #{tpu_custom_call.1} parent=1 // loop_body
      %s23 = ssub.s32 %s18, 1
      %s24 = ssub.s32 %s18, 2
      %s25 = sadd.s32 %s18, 1
      %s26 = ssub.s32 %s18, %s25
      %p27 = scmp.eq.s32.totalorder %s26, 0
      %s29 = sadd.s32 %s28, 1
      %s30 = scalar_select %p27, %s28, %s29
      %p33 = pneg %p27
      %p34 = scmp.eq.s32.totalorder %s18, 1
      %p35 = por %p33, %p34
      %p36 = scmp.ne.s32.totalorder %s28, %s31
      %p37 = scmp.eq.s32.totalorder %s18, 0
      %p38 = por %p36, %p37
      %p39 = scmp.ne.s32.totalorder %s28, %s31
      %p40 = scmp.eq.s32.totalorder %s23, 1
      %p41 = por %p39, %p40
      %p42 = scmp.ne.s32.totalorder %s31, %s32
      %p43 = scmp.eq.s32.totalorder %s23, 0
      %p44 = por %p42, %p43
      %p45 = scmp.ne.s32.totalorder %s31, %s32
      %p46 = scmp.eq.s32.totalorder %s24, 1
      %p47 = por %p45, %p46
      %p49 = scmp.ne.s32.totalorder %s32, %s48
      %p50 = scmp.eq.s32.totalorder %s24, 0
      %p51 = por %p49, %p50
      %s53 = sadd.s32 %s52, 1
      %p56 = scmp.eq.s32.totalorder %s18, 1
      %p57 = scmp.ne.s32.totalorder %s52, %s54
      %p58 = scmp.eq.s32.totalorder %s18, 0
      %p59 = por %p57, %p58
      %p60 = scmp.ne.s32.totalorder %s52, %s54
      %p61 = scmp.eq.s32.totalorder %s23, 1
      %p62 = por %p60, %p61
      %p63 = scmp.ne.s32.totalorder %s54, %s55
      %p64 = scmp.eq.s32.totalorder %s23, 0
      %p65 = por %p63, %p64
      %p66 = scmp.ne.s32.totalorder %s54, %s55
      %p67 = scmp.eq.s32.totalorder %s24, 1
      %p68 = por %p66, %p67
      %p70 = scmp.ne.s32.totalorder %s55, %s69
      %p71 = scmp.eq.s32.totalorder %s24, 0
      %p72 = por %p70, %p71
      %s74 = sadd.s32 %s73, 1
      %p77 = scmp.eq.s32.totalorder %s18, 1
      %p78 = scmp.ne.s32.totalorder %s73, %s75
      %p79 = scmp.eq.s32.totalorder %s18, 0
      %p80 = por %p78, %p79
      %p81 = scmp.ne.s32.totalorder %s73, %s75
      %p82 = scmp.eq.s32.totalorder %s23, 1
      %p83 = por %p81, %p82
      %p84 = scmp.ne.s32.totalorder %s75, %s76
      %p85 = scmp.eq.s32.totalorder %s23, 0
      %p86 = por %p84, %p85
      %p87 = scmp.ne.s32.totalorder %s75, %s76
      %p88 = scmp.eq.s32.totalorder %s24, 1
      %p89 = por %p87, %p88
      %p91 = scmp.ne.s32.totalorder %s76, %s90
      %p92 = scmp.eq.s32.totalorder %s24, 0
      %p93 = por %p91, %p92
      %s95 = sadd.s32 %s94, 1
      %p98 = scmp.eq.s32.totalorder %s18, 1
      %p99 = scmp.ne.s32.totalorder %s94, %s96
      %p100 = scmp.eq.s32.totalorder %s18, 0
      %p101 = por %p99, %p100
      %p102 = scmp.ne.s32.totalorder %s94, %s96
      %p103 = scmp.eq.s32.totalorder %s23, 1
      %p104 = por %p102, %p103
      %p105 = scmp.ne.s32.totalorder %s96, %s97
      %p106 = scmp.eq.s32.totalorder %s23, 0
      %p107 = por %p105, %p106
      %p108 = scmp.ne.s32.totalorder %s96, %s97
      %p109 = scmp.eq.s32.totalorder %s24, 1
      %p110 = por %p108, %p109
      %p112 = scmp.ne.s32.totalorder %s97, %s111
      %p113 = scmp.eq.s32.totalorder %s24, 0
      %p114 = por %p112, %p113
      %s116 = sadd.s32 %s115, 1
      %p119 = scmp.eq.s32.totalorder %s18, 1
      %p120 = scmp.ne.s32.totalorder %s115, %s117
      %p121 = scmp.eq.s32.totalorder %s18, 0
      %p122 = por %p120, %p121
      %p123 = scmp.ne.s32.totalorder %s115, %s117
      %p124 = scmp.eq.s32.totalorder %s23, 1
      %p125 = por %p123, %p124
      %p126 = scmp.ne.s32.totalorder %s117, %s118
      %p127 = scmp.eq.s32.totalorder %s23, 0
      %p128 = por %p126, %p127
      %p129 = scmp.ne.s32.totalorder %s117, %s118
      %p130 = scmp.eq.s32.totalorder %s24, 1
      %p131 = por %p129, %p130
      %p133 = scmp.ne.s32.totalorder %s118, %s132
      %p134 = scmp.eq.s32.totalorder %s24, 0
      %p135 = por %p133, %p134
      %s137 = sadd.s32 %s136, 1
      %p140 = scmp.eq.s32.totalorder %s18, 1
      %p141 = scmp.ne.s32.totalorder %s136, %s138
      %p142 = scmp.eq.s32.totalorder %s18, 0
      %p143 = por %p141, %p142
      %p144 = scmp.ne.s32.totalorder %s136, %s138
      %p145 = scmp.eq.s32.totalorder %s23, 1
      %p146 = por %p144, %p145
      %p147 = scmp.ne.s32.totalorder %s138, %s139
      %p148 = scmp.eq.s32.totalorder %s23, 0
      %p149 = por %p147, %p148
      %p150 = scmp.ne.s32.totalorder %s138, %s139
      %p151 = scmp.eq.s32.totalorder %s24, 1
      %p152 = por %p150, %p151
      %p154 = scmp.ne.s32.totalorder %s139, %s153
      %p155 = scmp.eq.s32.totalorder %s24, 0
      %p156 = por %p154, %p155
      %s158 = sadd.s32 %s157, 1
      %p161 = scmp.eq.s32.totalorder %s18, 1
      %p162 = scmp.ne.s32.totalorder %s157, %s159
      %p163 = scmp.eq.s32.totalorder %s18, 0
      %p164 = por %p162, %p163
      %p165 = scmp.ne.s32.totalorder %s157, %s159
      %p166 = scmp.eq.s32.totalorder %s23, 1
      %p167 = por %p165, %p166
      %p168 = scmp.ne.s32.totalorder %s159, %s160
      %p169 = scmp.eq.s32.totalorder %s23, 0
      %p170 = por %p168, %p169
      %p171 = scmp.ne.s32.totalorder %s159, %s160
      %p172 = scmp.eq.s32.totalorder %s24, 1
      %p173 = por %p171, %p172
      %p175 = scmp.ne.s32.totalorder %s160, %s174
      %p176 = scmp.eq.s32.totalorder %s24, 0
      %p177 = por %p175, %p176
      %s178 = ssub.s32 %s18, %s25
      %p179 = scmp.eq.s32.totalorder %s178, 0
      %s181 = sadd.s32 %s180, 1
      %s182 = scalar_select %p179, %s180, %s181
      %p185 = pneg %p179
      %p186 = scmp.eq.s32.totalorder %s18, 1
      %p187 = por %p185, %p186
      %p188 = scmp.ne.s32.totalorder %s180, %s183
      %p189 = scmp.eq.s32.totalorder %s18, 0
      %p190 = por %p188, %p189
      %p191 = scmp.ne.s32.totalorder %s180, %s183
      %p192 = scmp.eq.s32.totalorder %s23, 1
      %p193 = por %p191, %p192
      %p194 = scmp.ne.s32.totalorder %s183, %s184
      %p195 = scmp.eq.s32.totalorder %s23, 0
      %p196 = por %p194, %p195
      %p197 = scmp.ne.s32.totalorder %s183, %s184
      %p198 = scmp.eq.s32.totalorder %s24, 1
      %p199 = por %p197, %p198
      %p201 = scmp.ne.s32.totalorder %s184, %s200
      %p202 = scmp.eq.s32.totalorder %s24, 0
      %p203 = por %p201, %p202
      %p204 = scmp.le.s32.totalorder 1, %s18
      %p205 = scmp.lt.s32.totalorder %s18, 3
      %p206 = pnand %p204, %p205
      %p207 = pneg %p206
      // Predicated region
      $region9: #{tpu_custom_call.1} parent=5 // pred_check
        _
      $region10: #{tpu_custom_call.1} parent=5 // pred_check_branch
        %209 = sbr.rel (%p206) target = $region12
      $region11: #{tpu_custom_call.1} parent=5 // pred_region
        %s210 = ssub.s32 %s18, 1
        // Predicated region
        $region13: #{tpu_custom_call.1} parent=11 // pred_check
          %p211 = pneg %p65
        $region14: #{tpu_custom_call.1} parent=11 // pred_check_branch
          %213 = sbr.rel (%p211) target = $region16
        $region15: #{tpu_custom_call.1} parent=11 // pred_region
          _
        $region16: #{tpu_custom_call.1} parent=11 // pred_fallthru
          _
        // Predicated region
        $region17: #{tpu_custom_call.1} parent=11 // pred_check
          %p214 = pneg %p86
        $region18: #{tpu_custom_call.1} parent=11 // pred_check_branch
          %216 = sbr.rel (%p214) target = $region20
        $region19: #{tpu_custom_call.1} parent=11 // pred_region
          _
        $region20: #{tpu_custom_call.1} parent=11 // pred_fallthru
          _
        // Predicated region
        $region21: #{tpu_custom_call.1} parent=11 // pred_check
          %p217 = pneg %p107
        $region22: #{tpu_custom_call.1} parent=11 // pred_check_branch
          %219 = sbr.rel (%p217) target = $region24
        $region23: #{tpu_custom_call.1} parent=11 // pred_region
          _
        $region24: #{tpu_custom_call.1} parent=11 // pred_fallthru
          _
        // Predicated region
        $region25: #{tpu_custom_call.1} parent=11 // pred_check
          %p220 = pneg %p128
        $region26: #{tpu_custom_call.1} parent=11 // pred_check_branch
          %222 = sbr.rel (%p220) target = $region28
        $region27: #{tpu_custom_call.1} parent=11 // pred_region
          _
        $region28: #{tpu_custom_call.1} parent=11 // pred_fallthru
          _
        // Predicated region
        $region29: #{tpu_custom_call.1} parent=11 // pred_check
          %p223 = pneg %p149
        $region30: #{tpu_custom_call.1} parent=11 // pred_check_branch
          %225 = sbr.rel (%p223) target = $region32
        $region31: #{tpu_custom_call.1} parent=11 // pred_region
          _
        $region32: #{tpu_custom_call.1} parent=11 // pred_fallthru
          _
        // Predicated region
        $region33: #{tpu_custom_call.1} parent=11 // pred_check
          %p226 = pneg %p170
        $region34: #{tpu_custom_call.1} parent=11 // pred_check_branch
          %228 = sbr.rel (%p226) target = $region36
        $region35: #{tpu_custom_call.1} parent=11 // pred_region
          _
        $region36: #{tpu_custom_call.1} parent=11 // pred_fallthru
          _
      $region12: #{tpu_custom_call.1} parent=5 // pred_fallthru
        _
      %p229 = scmp.lt.s32.totalorder %s18, 2
      // Predicated region
      $region37: #{tpu_custom_call.1} parent=5 // pred_check
        %p230 = pneg %p229
      $region38: #{tpu_custom_call.1} parent=5 // pred_check_branch
        %232 = sbr.rel (%p230) target = $region40
      $region39: #{tpu_custom_call.1} parent=5 // pred_region
        // Predicated region
        $region41: #{tpu_custom_call.1} parent=39 // pred_check
          %p233 = pneg %p38
        $region42: #{tpu_custom_call.1} parent=39 // pred_check_branch
          %235 = sbr.rel (%p233) target = $region44
        $region43: #{tpu_custom_call.1} parent=39 // pred_region
          %s236 = smul.u32 4, %s18
          %p237 = scmp.lt.s32.totalorder %s236, 7
          %s238 = scalar_select %p237, %s236, 7
          %s239 = smul.addr %s238, 2
          %s240 = scalar_lea.vmem %s0, %s239
          %s241 = smul.u32 4, %s18
        $region44: #{tpu_custom_call.1} parent=39 // pred_fallthru
          _
      $region40: #{tpu_custom_call.1} parent=5 // pred_fallthru
        _
      %p242 = scmp.le.s32.totalorder 1, %s18
      %p243 = scmp.lt.s32.totalorder %s18, 3
      %p244 = pnand %p242, %p243
      %p245 = pneg %p244
      // Predicated region
      $region45: #{tpu_custom_call.1} parent=5 // pred_check
        _
      $region46: #{tpu_custom_call.1} parent=5 // pred_check_branch
        %247 = sbr.rel (%p244) target = $region48
      $region47: #{tpu_custom_call.1} parent=5 // pred_region
        %s248 = ssub.s32 %s18, 1
        %s249 = smul.u32 4, %s23
        %p250 = scmp.lt.s32.totalorder %s249, 7
        %s251 = scalar_select %p250, %s249, 7
        %s252 = smul.addr %s251, 2
        %s253 = scalar_lea.vmem %s0, %s252
        %p254 = pneg %p44
        %p255 = pneg %p41
        %p256 = pneg %p65
        %p257 = pneg %p62
        %p258 = pneg %p86
        %p259 = pneg %p83
        %p260 = pneg %p107
        %p261 = pneg %p104
        %p262 = pneg %p128
        %p263 = pneg %p125
        %p264 = pneg %p149
        %p265 = pneg %p146
        %p266 = pneg %p170
        %p267 = pneg %p167
        %p268 = pneg %p196
        %p269 = pneg %p193
        %s270 = sand.u32 %s183, 1
        %s271 = scalar_lea.sflag [#allocation4], %s270
        %s272 = sand.u32 %s183, 1
        %s273 = smul.addr %s272, 4
        %s274 = scalar_lea.vmem [#allocation3], %s273
        %s275 = smul.u32 4, %s23
        %p276 = scmp.lt.s32.totalorder %s275, 7
        %s277 = scalar_select %p276, %s275, 7
        %s278 = smul.addr %s277, 2
        %s279 = scalar_lea.vmem %s0, %s278
        %s280 = smul.u32 4, %s23
        %s281 = smul.u32 4, %s23
        %v282 = vld [vmem:[%s279] sm:$0xff]
        %v283 = vld [vmem:[%s1] sm:$0xff]
        %v284 = vld [vmem:[%s1 + $0x8] sm:$0xff]
        %v285 = vld [vmem:[%s1 + $0x10] sm:$0xff]
        %v286 = vld [vmem:[%s1 + $0x18] sm:$0xff]
        %v287 = vld [vmem:[%s1 + $0x20] sm:$0xff]
        %v288 = vld [vmem:[%s1 + $0x28] sm:$0xff]
        %v289 = vld [vmem:[%s1 + $0x30] sm:$0xff]
        %v290 = vld [vmem:[%s1 + $0x38] sm:$0xff]
        %292 = vset.pattern.permute.xlu0 0
        %293 = vperm.xlu0 %292, %v283
        %v294 = vpop.permute.xlu0 %293
        %297 = vset.pattern.permute.xlu0 0
        %298 = vperm.xlu0 %297, %v284
        %v299 = vpop.permute.xlu0 %298
        %302 = vset.pattern.permute.xlu0 0
        %303 = vperm.xlu0 %302, %v285
        %v304 = vpop.permute.xlu0 %303
        %307 = vset.pattern.permute.xlu0 0
        %308 = vperm.xlu0 %307, %v286
        %v309 = vpop.permute.xlu0 %308
        %312 = vset.pattern.permute.xlu0 0
        %313 = vperm.xlu0 %312, %v287
        %v314 = vpop.permute.xlu0 %313
        %317 = vset.pattern.permute.xlu0 0
        %318 = vperm.xlu0 %317, %v288
        %v319 = vpop.permute.xlu0 %318
        %322 = vset.pattern.permute.xlu0 0
        %323 = vperm.xlu0 %322, %v289
        %v324 = vpop.permute.xlu0 %323
        %327 = vset.pattern.permute.xlu0 0
        %328 = vperm.xlu0 %327, %v290
        %v329 = vpop.permute.xlu0 %328
        %v332 = vlaneseq
        %v333 = vshrl.u32 %v332, 7
        %v334 = vsub.s32 0, %v333
        %v335 = vrot.slane %v282, %v334
        %v336 = vlaneseq
        %v337 = vshrl.u32 %v336, 7
        %v338 = vsub.s32 2, %v337
        %v339 = vrot.slane %v282, %v338
        %v340 = vlaneseq
        %v341 = vshrl.u32 %v340, 7
        %v342 = vsub.s32 4, %v341
        %v343 = vrot.slane %v282, %v342
        %v344 = vlaneseq
        %v345 = vshrl.u32 %v344, 7
        %v346 = vsub.s32 6, %v345
        %v347 = vrot.slane %v282, %v346
        %v352 = vlaneseq
        %v353 = vshrl.u32 %v352, 7
        %v354 = vsub.s32 0, %v353
        %v355 = vrot.slane %v335, %v354
        %v356 = vlaneseq
        %v357 = vshrl.u32 %v356, 7
        %v358 = vsub.s32 0, %v357
        %v359 = vrot.slane %v339, %v358
        %v360 = vlaneseq
        %v361 = vshrl.u32 %v360, 7
        %v362 = vsub.s32 0, %v361
        %v363 = vrot.slane %v343, %v362
        %v364 = vlaneseq
        %v365 = vshrl.u32 %v364, 7
        %v366 = vsub.s32 0, %v365
        %v367 = vrot.slane %v347, %v366
        %v368 = vmul.f32 %v294, %v355
        %v369 = vmul.f32 %v294, %v359
        %v370 = vmul.f32 %v294, %v363
        %v371 = vmul.f32 %v294, %v367
        %v372 = vmul.f32 %v299, %v355
        %v373 = vmul.f32 %v299, %v359
        %v374 = vmul.f32 %v299, %v363
        %v375 = vmul.f32 %v299, %v367
        %v376 = vmul.f32 %v304, %v355
        %v377 = vmul.f32 %v304, %v359
        %v378 = vmul.f32 %v304, %v363
        %v379 = vmul.f32 %v304, %v367
        %v380 = vmul.f32 %v309, %v355
        %v381 = vmul.f32 %v309, %v359
        %v382 = vmul.f32 %v309, %v363
        %v383 = vmul.f32 %v309, %v367
        %v384 = vmul.f32 %v314, %v355
        %v385 = vmul.f32 %v314, %v359
        %v386 = vmul.f32 %v314, %v363
        %v387 = vmul.f32 %v314, %v367
        %v388 = vmul.f32 %v319, %v355
        %v389 = vmul.f32 %v319, %v359
        %v390 = vmul.f32 %v319, %v363
        %v391 = vmul.f32 %v319, %v367
        %v392 = vmul.f32 %v324, %v355
        %v393 = vmul.f32 %v324, %v359
        %v394 = vmul.f32 %v324, %v363
        %v395 = vmul.f32 %v324, %v367
        %v396 = vmul.f32 %v329, %v355
        %v397 = vmul.f32 %v329, %v359
        %v398 = vmul.f32 %v329, %v363
        %v399 = vmul.f32 %v329, %v367
        %400 = vset.pattern.permute.xlu0 1
        %401 = vperm.xlu0 %400, %v283
        %v402 = vpop.permute.xlu0 %401
        %404 = vset.pattern.permute.xlu0 1
        %405 = vperm.xlu0 %404, %v284
        %v406 = vpop.permute.xlu0 %405
        %408 = vset.pattern.permute.xlu0 1
        %409 = vperm.xlu0 %408, %v285
        %v410 = vpop.permute.xlu0 %409
        %412 = vset.pattern.permute.xlu0 1
        %413 = vperm.xlu0 %412, %v286
        %v414 = vpop.permute.xlu0 %413
        %416 = vset.pattern.permute.xlu0 1
        %417 = vperm.xlu0 %416, %v287
        %v418 = vpop.permute.xlu0 %417
        %420 = vset.pattern.permute.xlu0 1
        %421 = vperm.xlu0 %420, %v288
        %v422 = vpop.permute.xlu0 %421
        %424 = vset.pattern.permute.xlu0 1
        %425 = vperm.xlu0 %424, %v289
        %v426 = vpop.permute.xlu0 %425
        %428 = vset.pattern.permute.xlu0 1
        %429 = vperm.xlu0 %428, %v290
        %v430 = vpop.permute.xlu0 %429
        %v432 = vlaneseq
        %v433 = vshrl.u32 %v432, 7
        %v434 = vsub.s32 1, %v433
        %v435 = vrot.slane %v282, %v434
        %v436 = vlaneseq
        %v437 = vshrl.u32 %v436, 7
        %v438 = vsub.s32 3, %v437
        %v439 = vrot.slane %v282, %v438
        %v440 = vlaneseq
        %v441 = vshrl.u32 %v440, 7
        %v442 = vsub.s32 5, %v441
        %v443 = vrot.slane %v282, %v442
        %v444 = vlaneseq
        %v445 = vshrl.u32 %v444, 7
        %v446 = vsub.s32 7, %v445
        %v447 = vrot.slane %v282, %v446
        %v452 = vlaneseq
        %v453 = vshrl.u32 %v452, 7
        %v454 = vsub.s32 1, %v453
        %v455 = vrot.slane %v435, %v454
        %v456 = vlaneseq
        %v457 = vshrl.u32 %v456, 7
        %v458 = vsub.s32 1, %v457
        %v459 = vrot.slane %v439, %v458
        %v460 = vlaneseq
        %v461 = vshrl.u32 %v460, 7
        %v462 = vsub.s32 1, %v461
        %v463 = vrot.slane %v443, %v462
        %v464 = vlaneseq
        %v465 = vshrl.u32 %v464, 7
        %v466 = vsub.s32 1, %v465
        %v467 = vrot.slane %v447, %v466
        %v468 = vmul.f32 %v402, %v455
        %v469 = vmul.f32 %v402, %v459
        %v470 = vmul.f32 %v402, %v463
        %v471 = vmul.f32 %v402, %v467
        %v472 = vmul.f32 %v406, %v455
        %v473 = vmul.f32 %v406, %v459
        %v474 = vmul.f32 %v406, %v463
        %v475 = vmul.f32 %v406, %v467
        %v476 = vmul.f32 %v410, %v455
        %v477 = vmul.f32 %v410, %v459
        %v478 = vmul.f32 %v410, %v463
        %v479 = vmul.f32 %v410, %v467
        %v480 = vmul.f32 %v414, %v455
        %v481 = vmul.f32 %v414, %v459
        %v482 = vmul.f32 %v414, %v463
        %v483 = vmul.f32 %v414, %v467
        %v484 = vmul.f32 %v418, %v455
        %v485 = vmul.f32 %v418, %v459
        %v486 = vmul.f32 %v418, %v463
        %v487 = vmul.f32 %v418, %v467
        %v488 = vmul.f32 %v422, %v455
        %v489 = vmul.f32 %v422, %v459
        %v490 = vmul.f32 %v422, %v463
        %v491 = vmul.f32 %v422, %v467
        %v492 = vmul.f32 %v426, %v455
        %v493 = vmul.f32 %v426, %v459
        %v494 = vmul.f32 %v426, %v463
        %v495 = vmul.f32 %v426, %v467
        %v496 = vmul.f32 %v430, %v455
        %v497 = vmul.f32 %v430, %v459
        %v498 = vmul.f32 %v430, %v463
        %v499 = vmul.f32 %v430, %v467
        %v500 = vadd.f32 %v368, %v468
        %v501 = vadd.f32 %v369, %v469
        %v502 = vadd.f32 %v370, %v470
        %v503 = vadd.f32 %v371, %v471
        %v504 = vadd.f32 %v372, %v472
        %v505 = vadd.f32 %v373, %v473
        %v506 = vadd.f32 %v374, %v474
        %v507 = vadd.f32 %v375, %v475
        %v508 = vadd.f32 %v376, %v476
        %v509 = vadd.f32 %v377, %v477
        %v510 = vadd.f32 %v378, %v478
        %v511 = vadd.f32 %v379, %v479
        %v512 = vadd.f32 %v380, %v480
        %v513 = vadd.f32 %v381, %v481
        %v514 = vadd.f32 %v382, %v482
        %v515 = vadd.f32 %v383, %v483
        %v516 = vadd.f32 %v384, %v484
        %v517 = vadd.f32 %v385, %v485
        %v518 = vadd.f32 %v386, %v486
        %v519 = vadd.f32 %v387, %v487
        %v520 = vadd.f32 %v388, %v488
        %v521 = vadd.f32 %v389, %v489
        %v522 = vadd.f32 %v390, %v490
        %v523 = vadd.f32 %v391, %v491
        %v524 = vadd.f32 %v392, %v492
        %v525 = vadd.f32 %v393, %v493
        %v526 = vadd.f32 %v394, %v494
        %v527 = vadd.f32 %v395, %v495
        %v528 = vadd.f32 %v396, %v496
        %v529 = vadd.f32 %v397, %v497
        %v530 = vadd.f32 %v398, %v498
        %v531 = vadd.f32 %v399, %v499
        %v532 = vld [vmem:[%s2] sm:$0xff]
        %v533 = vld [vmem:[%s2 + $0x8] sm:$0xff]
        %v534 = vld [vmem:[%s2 + $0x10] sm:$0xff]
        %v535 = vld [vmem:[%s2 + $0x18] sm:$0xff]
        %v536 = vld [vmem:[%s2 + $0x20] sm:$0xff]
        %v537 = vld [vmem:[%s2 + $0x28] sm:$0xff]
        %v538 = vld [vmem:[%s2 + $0x30] sm:$0xff]
        %v539 = vld [vmem:[%s2 + $0x38] sm:$0xff]
        %541 = vset.pattern.permute.xlu0 0
        %542 = vperm.xlu0 %541, %v532
        %v543 = vpop.permute.xlu0 %542
        %546 = vset.pattern.permute.xlu0 0
        %547 = vperm.xlu0 %546, %v533
        %v548 = vpop.permute.xlu0 %547
        %551 = vset.pattern.permute.xlu0 0
        %552 = vperm.xlu0 %551, %v534
        %v553 = vpop.permute.xlu0 %552
        %556 = vset.pattern.permute.xlu0 0
        %557 = vperm.xlu0 %556, %v535
        %v558 = vpop.permute.xlu0 %557
        %561 = vset.pattern.permute.xlu0 0
        %562 = vperm.xlu0 %561, %v536
        %v563 = vpop.permute.xlu0 %562
        %566 = vset.pattern.permute.xlu0 0
        %567 = vperm.xlu0 %566, %v537
        %v568 = vpop.permute.xlu0 %567
        %571 = vset.pattern.permute.xlu0 0
        %572 = vperm.xlu0 %571, %v538
        %v573 = vpop.permute.xlu0 %572
        %576 = vset.pattern.permute.xlu0 0
        %577 = vperm.xlu0 %576, %v539
        %v578 = vpop.permute.xlu0 %577
        %v580 = vadd.f32 %v500, %v543
        %v581 = vadd.f32 %v501, %v543
        %v582 = vadd.f32 %v502, %v543
        %v583 = vadd.f32 %v503, %v543
        %v584 = vadd.f32 %v504, %v548
        %v585 = vadd.f32 %v505, %v548
        %v586 = vadd.f32 %v506, %v548
        %v587 = vadd.f32 %v507, %v548
        %v588 = vadd.f32 %v508, %v553
        %v589 = vadd.f32 %v509, %v553
        %v590 = vadd.f32 %v510, %v553
        %v591 = vadd.f32 %v511, %v553
        %v592 = vadd.f32 %v512, %v558
        %v593 = vadd.f32 %v513, %v558
        %v594 = vadd.f32 %v514, %v558
        %v595 = vadd.f32 %v515, %v558
        %v596 = vadd.f32 %v516, %v563
        %v597 = vadd.f32 %v517, %v563
        %v598 = vadd.f32 %v518, %v563
        %v599 = vadd.f32 %v519, %v563
        %v600 = vadd.f32 %v520, %v568
        %v601 = vadd.f32 %v521, %v568
        %v602 = vadd.f32 %v522, %v568
        %v603 = vadd.f32 %v523, %v568
        %v604 = vadd.f32 %v524, %v573
        %v605 = vadd.f32 %v525, %v573
        %v606 = vadd.f32 %v526, %v573
        %v607 = vadd.f32 %v527, %v573
        %v608 = vadd.f32 %v528, %v578
        %v609 = vadd.f32 %v529, %v578
        %v610 = vadd.f32 %v530, %v578
        %v611 = vadd.f32 %v531, %v578
        %v612 = vmul.f32 %v580, 0.5
        %v613 = vmul.f32 %v581, 0.5
        %v614 = vmul.f32 %v582, 0.5
        %v615 = vmul.f32 %v583, 0.5
        %v616 = vmul.f32 %v584, 0.5
        %v617 = vmul.f32 %v585, 0.5
        %v618 = vmul.f32 %v586, 0.5
        %v619 = vmul.f32 %v587, 0.5
        %v620 = vmul.f32 %v588, 0.5
        %v621 = vmul.f32 %v589, 0.5
        %v622 = vmul.f32 %v590, 0.5
        %v623 = vmul.f32 %v591, 0.5
        %v624 = vmul.f32 %v592, 0.5
        %v625 = vmul.f32 %v593, 0.5
        %v626 = vmul.f32 %v594, 0.5
        %v627 = vmul.f32 %v595, 0.5
        %v628 = vmul.f32 %v596, 0.5
        %v629 = vmul.f32 %v597, 0.5
        %v630 = vmul.f32 %v598, 0.5
        %v631 = vmul.f32 %v599, 0.5
        %v632 = vmul.f32 %v600, 0.5
        %v633 = vmul.f32 %v601, 0.5
        %v634 = vmul.f32 %v602, 0.5
        %v635 = vmul.f32 %v603, 0.5
        %v636 = vmul.f32 %v604, 0.5
        %v637 = vmul.f32 %v605, 0.5
        %v638 = vmul.f32 %v606, 0.5
        %v639 = vmul.f32 %v607, 0.5
        %v640 = vmul.f32 %v608, 0.5
        %v641 = vmul.f32 %v609, 0.5
        %v642 = vmul.f32 %v610, 0.5
        %v643 = vmul.f32 %v611, 0.5
        %v644 = vmul.f32 %v580, 0.70710677
        %v645 = vmul.f32 %v581, 0.70710677
        %v646 = vmul.f32 %v582, 0.70710677
        %v647 = vmul.f32 %v583, 0.70710677
        %v648 = vmul.f32 %v584, 0.70710677
        %v649 = vmul.f32 %v585, 0.70710677
        %v650 = vmul.f32 %v586, 0.70710677
        %v651 = vmul.f32 %v587, 0.70710677
        %v652 = vmul.f32 %v588, 0.70710677
        %v653 = vmul.f32 %v589, 0.70710677
        %v654 = vmul.f32 %v590, 0.70710677
        %v655 = vmul.f32 %v591, 0.70710677
        %v656 = vmul.f32 %v592, 0.70710677
        %v657 = vmul.f32 %v593, 0.70710677
        %v658 = vmul.f32 %v594, 0.70710677
        %v659 = vmul.f32 %v595, 0.70710677
        %v660 = vmul.f32 %v596, 0.70710677
        %v661 = vmul.f32 %v597, 0.70710677
        %v662 = vmul.f32 %v598, 0.70710677
        %v663 = vmul.f32 %v599, 0.70710677
        %v664 = vmul.f32 %v600, 0.70710677
        %v665 = vmul.f32 %v601, 0.70710677
        %v666 = vmul.f32 %v602, 0.70710677
        %v667 = vmul.f32 %v603, 0.70710677
        %v668 = vmul.f32 %v604, 0.70710677
        %v669 = vmul.f32 %v605, 0.70710677
        %v670 = vmul.f32 %v606, 0.70710677
        %v671 = vmul.f32 %v607, 0.70710677
        %v672 = vmul.f32 %v608, 0.70710677
        %v673 = vmul.f32 %v609, 0.70710677
        %v674 = vmul.f32 %v610, 0.70710677
        %v675 = vmul.f32 %v611, 0.70710677
        %v676 = vand.u32 2147483647, %v644
        %v677 = vand.u32 2147483647, %v645
        %v678 = vand.u32 2147483647, %v646
        %v679 = vand.u32 2147483647, %v647
        %v680 = vand.u32 2147483647, %v648
        %v681 = vand.u32 2147483647, %v649
        %v682 = vand.u32 2147483647, %v650
        %v683 = vand.u32 2147483647, %v651
        %v684 = vand.u32 2147483647, %v652
        %v685 = vand.u32 2147483647, %v653
        %v686 = vand.u32 2147483647, %v654
        %v687 = vand.u32 2147483647, %v655
        %v688 = vand.u32 2147483647, %v656
        %v689 = vand.u32 2147483647, %v657
        %v690 = vand.u32 2147483647, %v658
        %v691 = vand.u32 2147483647, %v659
        %v692 = vand.u32 2147483647, %v660
        %v693 = vand.u32 2147483647, %v661
        %v694 = vand.u32 2147483647, %v662
        %v695 = vand.u32 2147483647, %v663
        %v696 = vand.u32 2147483647, %v664
        %v697 = vand.u32 2147483647, %v665
        %v698 = vand.u32 2147483647, %v666
        %v699 = vand.u32 2147483647, %v667
        %v700 = vand.u32 2147483647, %v668
        %v701 = vand.u32 2147483647, %v669
        %v702 = vand.u32 2147483647, %v670
        %v703 = vand.u32 2147483647, %v671
        %v704 = vand.u32 2147483647, %v672
        %v705 = vand.u32 2147483647, %v673
        %v706 = vand.u32 2147483647, %v674
        %v707 = vand.u32 2147483647, %v675
        %v708 = vmul.f32 %v676, 0.3275911
        %v709 = vmul.f32 %v677, 0.3275911
        %v710 = vmul.f32 %v678, 0.3275911
        %v711 = vmul.f32 %v679, 0.3275911
        %v712 = vmul.f32 %v680, 0.3275911
        %v713 = vmul.f32 %v681, 0.3275911
        %v714 = vmul.f32 %v682, 0.3275911
        %v715 = vmul.f32 %v683, 0.3275911
        %v716 = vmul.f32 %v684, 0.3275911
        %v717 = vmul.f32 %v685, 0.3275911
        %v718 = vmul.f32 %v686, 0.3275911
        %v719 = vmul.f32 %v687, 0.3275911
        %v720 = vmul.f32 %v688, 0.3275911
        %v721 = vmul.f32 %v689, 0.3275911
        %v722 = vmul.f32 %v690, 0.3275911
        %v723 = vmul.f32 %v691, 0.3275911
        %v724 = vmul.f32 %v692, 0.3275911
        %v725 = vmul.f32 %v693, 0.3275911
        %v726 = vmul.f32 %v694, 0.3275911
        %v727 = vmul.f32 %v695, 0.3275911
        %v728 = vmul.f32 %v696, 0.3275911
        %v729 = vmul.f32 %v697, 0.3275911
        %v730 = vmul.f32 %v698, 0.3275911
        %v731 = vmul.f32 %v699, 0.3275911
        %v732 = vmul.f32 %v700, 0.3275911
        %v733 = vmul.f32 %v701, 0.3275911
        %v734 = vmul.f32 %v702, 0.3275911
        %v735 = vmul.f32 %v703, 0.3275911
        %v736 = vmul.f32 %v704, 0.3275911
        %v737 = vmul.f32 %v705, 0.3275911
        %v738 = vmul.f32 %v706, 0.3275911
        %v739 = vmul.f32 %v707, 0.3275911
        %v740 = vadd.f32 %v708, 1.0
        %v741 = vadd.f32 %v709, 1.0
        %v742 = vadd.f32 %v710, 1.0
        %v743 = vadd.f32 %v711, 1.0
        %v744 = vadd.f32 %v712, 1.0
        %v745 = vadd.f32 %v713, 1.0
        %v746 = vadd.f32 %v714, 1.0
        %v747 = vadd.f32 %v715, 1.0
        %v748 = vadd.f32 %v716, 1.0
        %v749 = vadd.f32 %v717, 1.0
        %v750 = vadd.f32 %v718, 1.0
        %v751 = vadd.f32 %v719, 1.0
        %v752 = vadd.f32 %v720, 1.0
        %v753 = vadd.f32 %v721, 1.0
        %v754 = vadd.f32 %v722, 1.0
        %v755 = vadd.f32 %v723, 1.0
        %v756 = vadd.f32 %v724, 1.0
        %v757 = vadd.f32 %v725, 1.0
        %v758 = vadd.f32 %v726, 1.0
        %v759 = vadd.f32 %v727, 1.0
        %v760 = vadd.f32 %v728, 1.0
        %v761 = vadd.f32 %v729, 1.0
        %v762 = vadd.f32 %v730, 1.0
        %v763 = vadd.f32 %v731, 1.0
        %v764 = vadd.f32 %v732, 1.0
        %v765 = vadd.f32 %v733, 1.0
        %v766 = vadd.f32 %v734, 1.0
        %v767 = vadd.f32 %v735, 1.0
        %v768 = vadd.f32 %v736, 1.0
        %v769 = vadd.f32 %v737, 1.0
        %v770 = vadd.f32 %v738, 1.0
        %v771 = vadd.f32 %v739, 1.0
        %v772 = vrcp.pop %v740
        %v773 = vmul.f32 1.0, %v772
        %v774 = vrcp.pop %v741
        %v775 = vmul.f32 1.0, %v774
        %v776 = vrcp.pop %v742
        %v777 = vmul.f32 1.0, %v776
        %v778 = vrcp.pop %v743
        %v779 = vmul.f32 1.0, %v778
        %v780 = vrcp.pop %v744
        %v781 = vmul.f32 1.0, %v780
        %v782 = vrcp.pop %v745
        %v783 = vmul.f32 1.0, %v782
        %v784 = vrcp.pop %v746
        %v785 = vmul.f32 1.0, %v784
        %v786 = vrcp.pop %v747
        %v787 = vmul.f32 1.0, %v786
        %v788 = vrcp.pop %v748
        %v789 = vmul.f32 1.0, %v788
        %v790 = vrcp.pop %v749
        %v791 = vmul.f32 1.0, %v790
        %v792 = vrcp.pop %v750
        %v793 = vmul.f32 1.0, %v792
        %v794 = vrcp.pop %v751
        %v795 = vmul.f32 1.0, %v794
        %v796 = vrcp.pop %v752
        %v797 = vmul.f32 1.0, %v796
        %v798 = vrcp.pop %v753
        %v799 = vmul.f32 1.0, %v798
        %v800 = vrcp.pop %v754
        %v801 = vmul.f32 1.0, %v800
        %v802 = vrcp.pop %v755
        %v803 = vmul.f32 1.0, %v802
        %v804 = vrcp.pop %v756
        %v805 = vmul.f32 1.0, %v804
        %v806 = vrcp.pop %v757
        %v807 = vmul.f32 1.0, %v806
        %v808 = vrcp.pop %v758
        %v809 = vmul.f32 1.0, %v808
        %v810 = vrcp.pop %v759
        %v811 = vmul.f32 1.0, %v810
        %v812 = vrcp.pop %v760
        %v813 = vmul.f32 1.0, %v812
        %v814 = vrcp.pop %v761
        %v815 = vmul.f32 1.0, %v814
        %v816 = vrcp.pop %v762
        %v817 = vmul.f32 1.0, %v816
        %v818 = vrcp.pop %v763
        %v819 = vmul.f32 1.0, %v818
        %v820 = vrcp.pop %v764
        %v821 = vmul.f32 1.0, %v820
        %v822 = vrcp.pop %v765
        %v823 = vmul.f32 1.0, %v822
        %v824 = vrcp.pop %v766
        %v825 = vmul.f32 1.0, %v824
        %v826 = vrcp.pop %v767
        %v827 = vmul.f32 1.0, %v826
        %v828 = vrcp.pop %v768
        %v829 = vmul.f32 1.0, %v828
        %v830 = vrcp.pop %v769
        %v831 = vmul.f32 1.0, %v830
        %v832 = vrcp.pop %v770
        %v833 = vmul.f32 1.0, %v832
        %v834 = vrcp.pop %v771
        %v835 = vmul.f32 1.0, %v834
        %v836 = vmul.f32 %v773, 1.0614054
        %v837 = vmul.f32 %v775, 1.0614054
        %v838 = vmul.f32 %v777, 1.0614054
        %v839 = vmul.f32 %v779, 1.0614054
        %v840 = vmul.f32 %v781, 1.0614054
        %v841 = vmul.f32 %v783, 1.0614054
        %v842 = vmul.f32 %v785, 1.0614054
        %v843 = vmul.f32 %v787, 1.0614054
        %v844 = vmul.f32 %v789, 1.0614054
        %v845 = vmul.f32 %v791, 1.0614054
        %v846 = vmul.f32 %v793, 1.0614054
        %v847 = vmul.f32 %v795, 1.0614054
        %v848 = vmul.f32 %v797, 1.0614054
        %v849 = vmul.f32 %v799, 1.0614054
        %v850 = vmul.f32 %v801, 1.0614054
        %v851 = vmul.f32 %v803, 1.0614054
        %v852 = vmul.f32 %v805, 1.0614054
        %v853 = vmul.f32 %v807, 1.0614054
        %v854 = vmul.f32 %v809, 1.0614054
        %v855 = vmul.f32 %v811, 1.0614054
        %v856 = vmul.f32 %v813, 1.0614054
        %v857 = vmul.f32 %v815, 1.0614054
        %v858 = vmul.f32 %v817, 1.0614054
        %v859 = vmul.f32 %v819, 1.0614054
        %v860 = vmul.f32 %v821, 1.0614054
        %v861 = vmul.f32 %v823, 1.0614054
        %v862 = vmul.f32 %v825, 1.0614054
        %v863 = vmul.f32 %v827, 1.0614054
        %v864 = vmul.f32 %v829, 1.0614054
        %v865 = vmul.f32 %v831, 1.0614054
        %v866 = vmul.f32 %v833, 1.0614054
        %v867 = vmul.f32 %v835, 1.0614054
        %v868 = vadd.f32 %v836, -1.4531521
        %v869 = vadd.f32 %v837, -1.4531521
        %v870 = vadd.f32 %v838, -1.4531521
        %v871 = vadd.f32 %v839, -1.4531521
        %v872 = vadd.f32 %v840, -1.4531521
        %v873 = vadd.f32 %v841, -1.4531521
        %v874 = vadd.f32 %v842, -1.4531521
        %v875 = vadd.f32 %v843, -1.4531521
        %v876 = vadd.f32 %v844, -1.4531521
        %v877 = vadd.f32 %v845, -1.4531521
        %v878 = vadd.f32 %v846, -1.4531521
        %v879 = vadd.f32 %v847, -1.4531521
        %v880 = vadd.f32 %v848, -1.4531521
        %v881 = vadd.f32 %v849, -1.4531521
        %v882 = vadd.f32 %v850, -1.4531521
        %v883 = vadd.f32 %v851, -1.4531521
        %v884 = vadd.f32 %v852, -1.4531521
        %v885 = vadd.f32 %v853, -1.4531521
        %v886 = vadd.f32 %v854, -1.4531521
        %v887 = vadd.f32 %v855, -1.4531521
        %v888 = vadd.f32 %v856, -1.4531521
        %v889 = vadd.f32 %v857, -1.4531521
        %v890 = vadd.f32 %v858, -1.4531521
        %v891 = vadd.f32 %v859, -1.4531521
        %v892 = vadd.f32 %v860, -1.4531521
        %v893 = vadd.f32 %v861, -1.4531521
        %v894 = vadd.f32 %v862, -1.4531521
        %v895 = vadd.f32 %v863, -1.4531521
        %v896 = vadd.f32 %v864, -1.4531521
        %v897 = vadd.f32 %v865, -1.4531521
        %v898 = vadd.f32 %v866, -1.4531521
        %v899 = vadd.f32 %v867, -1.4531521
        %v900 = vmul.f32 %v868, %v773
        %v901 = vmul.f32 %v869, %v775
        %v902 = vmul.f32 %v870, %v777
        %v903 = vmul.f32 %v871, %v779
        %v904 = vmul.f32 %v872, %v781
        %v905 = vmul.f32 %v873, %v783
        %v906 = vmul.f32 %v874, %v785
        %v907 = vmul.f32 %v875, %v787
        %v908 = vmul.f32 %v876, %v789
        %v909 = vmul.f32 %v877, %v791
        %v910 = vmul.f32 %v878, %v793
        %v911 = vmul.f32 %v879, %v795
        %v912 = vmul.f32 %v880, %v797
        %v913 = vmul.f32 %v881, %v799
        %v914 = vmul.f32 %v882, %v801
        %v915 = vmul.f32 %v883, %v803
        %v916 = vmul.f32 %v884, %v805
        %v917 = vmul.f32 %v885, %v807
        %v918 = vmul.f32 %v886, %v809
        %v919 = vmul.f32 %v887, %v811
        %v920 = vmul.f32 %v888, %v813
        %v921 = vmul.f32 %v889, %v815
        %v922 = vmul.f32 %v890, %v817
        %v923 = vmul.f32 %v891, %v819
        %v924 = vmul.f32 %v892, %v821
        %v925 = vmul.f32 %v893, %v823
        %v926 = vmul.f32 %v894, %v825
        %v927 = vmul.f32 %v895, %v827
        %v928 = vmul.f32 %v896, %v829
        %v929 = vmul.f32 %v897, %v831
        %v930 = vmul.f32 %v898, %v833
        %v931 = vmul.f32 %v899, %v835
        %v932 = vadd.f32 %v900, 1.4214138
        %v933 = vadd.f32 %v901, 1.4214138
        %v934 = vadd.f32 %v902, 1.4214138
        %v935 = vadd.f32 %v903, 1.4214138
        %v936 = vadd.f32 %v904, 1.4214138
        %v937 = vadd.f32 %v905, 1.4214138
        %v938 = vadd.f32 %v906, 1.4214138
        %v939 = vadd.f32 %v907, 1.4214138
        %v940 = vadd.f32 %v908, 1.4214138
        %v941 = vadd.f32 %v909, 1.4214138
        %v942 = vadd.f32 %v910, 1.4214138
        %v943 = vadd.f32 %v911, 1.4214138
        %v944 = vadd.f32 %v912, 1.4214138
        %v945 = vadd.f32 %v913, 1.4214138
        %v946 = vadd.f32 %v914, 1.4214138
        %v947 = vadd.f32 %v915, 1.4214138
        %v948 = vadd.f32 %v916, 1.4214138
        %v949 = vadd.f32 %v917, 1.4214138
        %v950 = vadd.f32 %v918, 1.4214138
        %v951 = vadd.f32 %v919, 1.4214138
        %v952 = vadd.f32 %v920, 1.4214138
        %v953 = vadd.f32 %v921, 1.4214138
        %v954 = vadd.f32 %v922, 1.4214138
        %v955 = vadd.f32 %v923, 1.4214138
        %v956 = vadd.f32 %v924, 1.4214138
        %v957 = vadd.f32 %v925, 1.4214138
        %v958 = vadd.f32 %v926, 1.4214138
        %v959 = vadd.f32 %v927, 1.4214138
        %v960 = vadd.f32 %v928, 1.4214138
        %v961 = vadd.f32 %v929, 1.4214138
        %v962 = vadd.f32 %v930, 1.4214138
        %v963 = vadd.f32 %v931, 1.4214138
        %v964 = vmul.f32 %v932, %v773
        %v965 = vmul.f32 %v933, %v775
        %v966 = vmul.f32 %v934, %v777
        %v967 = vmul.f32 %v935, %v779
        %v968 = vmul.f32 %v936, %v781
        %v969 = vmul.f32 %v937, %v783
        %v970 = vmul.f32 %v938, %v785
        %v971 = vmul.f32 %v939, %v787
        %v972 = vmul.f32 %v940, %v789
        %v973 = vmul.f32 %v941, %v791
        %v974 = vmul.f32 %v942, %v793
        %v975 = vmul.f32 %v943, %v795
        %v976 = vmul.f32 %v944, %v797
        %v977 = vmul.f32 %v945, %v799
        %v978 = vmul.f32 %v946, %v801
        %v979 = vmul.f32 %v947, %v803
        %v980 = vmul.f32 %v948, %v805
        %v981 = vmul.f32 %v949, %v807
        %v982 = vmul.f32 %v950, %v809
        %v983 = vmul.f32 %v951, %v811
        %v984 = vmul.f32 %v952, %v813
        %v985 = vmul.f32 %v953, %v815
        %v986 = vmul.f32 %v954, %v817
        %v987 = vmul.f32 %v955, %v819
        %v988 = vmul.f32 %v956, %v821
        %v989 = vmul.f32 %v957, %v823
        %v990 = vmul.f32 %v958, %v825
        %v991 = vmul.f32 %v959, %v827
        %v992 = vmul.f32 %v960, %v829
        %v993 = vmul.f32 %v961, %v831
        %v994 = vmul.f32 %v962, %v833
        %v995 = vmul.f32 %v963, %v835
        %v996 = vadd.f32 %v964, -0.28449672
        %v997 = vadd.f32 %v965, -0.28449672
        %v998 = vadd.f32 %v966, -0.28449672
        %v999 = vadd.f32 %v967, -0.28449672
        %v1000 = vadd.f32 %v968, -0.28449672
        %v1001 = vadd.f32 %v969, -0.28449672
        %v1002 = vadd.f32 %v970, -0.28449672
        %v1003 = vadd.f32 %v971, -0.28449672
        %v1004 = vadd.f32 %v972, -0.28449672
        %v1005 = vadd.f32 %v973, -0.28449672
        %v1006 = vadd.f32 %v974, -0.28449672
        %v1007 = vadd.f32 %v975, -0.28449672
        %v1008 = vadd.f32 %v976, -0.28449672
        %v1009 = vadd.f32 %v977, -0.28449672
        %v1010 = vadd.f32 %v978, -0.28449672
        %v1011 = vadd.f32 %v979, -0.28449672
        %v1012 = vadd.f32 %v980, -0.28449672
        %v1013 = vadd.f32 %v981, -0.28449672
        %v1014 = vadd.f32 %v982, -0.28449672
        %v1015 = vadd.f32 %v983, -0.28449672
        %v1016 = vadd.f32 %v984, -0.28449672
        %v1017 = vadd.f32 %v985, -0.28449672
        %v1018 = vadd.f32 %v986, -0.28449672
        %v1019 = vadd.f32 %v987, -0.28449672
        %v1020 = vadd.f32 %v988, -0.28449672
        %v1021 = vadd.f32 %v989, -0.28449672
        %v1022 = vadd.f32 %v990, -0.28449672
        %v1023 = vadd.f32 %v991, -0.28449672
        %v1024 = vadd.f32 %v992, -0.28449672
        %v1025 = vadd.f32 %v993, -0.28449672
        %v1026 = vadd.f32 %v994, -0.28449672
        %v1027 = vadd.f32 %v995, -0.28449672
        %v1028 = vmul.f32 %v996, %v773
        %v1029 = vmul.f32 %v997, %v775
        %v1030 = vmul.f32 %v998, %v777
        %v1031 = vmul.f32 %v999, %v779
        %v1032 = vmul.f32 %v1000, %v781
        %v1033 = vmul.f32 %v1001, %v783
        %v1034 = vmul.f32 %v1002, %v785
        %v1035 = vmul.f32 %v1003, %v787
        %v1036 = vmul.f32 %v1004, %v789
        %v1037 = vmul.f32 %v1005, %v791
        %v1038 = vmul.f32 %v1006, %v793
        %v1039 = vmul.f32 %v1007, %v795
        %v1040 = vmul.f32 %v1008, %v797
        %v1041 = vmul.f32 %v1009, %v799
        %v1042 = vmul.f32 %v1010, %v801
        %v1043 = vmul.f32 %v1011, %v803
        %v1044 = vmul.f32 %v1012, %v805
        %v1045 = vmul.f32 %v1013, %v807
        %v1046 = vmul.f32 %v1014, %v809
        %v1047 = vmul.f32 %v1015, %v811
        %v1048 = vmul.f32 %v1016, %v813
        %v1049 = vmul.f32 %v1017, %v815
        %v1050 = vmul.f32 %v1018, %v817
        %v1051 = vmul.f32 %v1019, %v819
        %v1052 = vmul.f32 %v1020, %v821
        %v1053 = vmul.f32 %v1021, %v823
        %v1054 = vmul.f32 %v1022, %v825
        %v1055 = vmul.f32 %v1023, %v827
        %v1056 = vmul.f32 %v1024, %v829
        %v1057 = vmul.f32 %v1025, %v831
        %v1058 = vmul.f32 %v1026, %v833
        %v1059 = vmul.f32 %v1027, %v835
        %v1060 = vadd.f32 %v1028, 0.2548296
        %v1061 = vadd.f32 %v1029, 0.2548296
        %v1062 = vadd.f32 %v1030, 0.2548296
        %v1063 = vadd.f32 %v1031, 0.2548296
        %v1064 = vadd.f32 %v1032, 0.2548296
        %v1065 = vadd.f32 %v1033, 0.2548296
        %v1066 = vadd.f32 %v1034, 0.2548296
        %v1067 = vadd.f32 %v1035, 0.2548296
        %v1068 = vadd.f32 %v1036, 0.2548296
        %v1069 = vadd.f32 %v1037, 0.2548296
        %v1070 = vadd.f32 %v1038, 0.2548296
        %v1071 = vadd.f32 %v1039, 0.2548296
        %v1072 = vadd.f32 %v1040, 0.2548296
        %v1073 = vadd.f32 %v1041, 0.2548296
        %v1074 = vadd.f32 %v1042, 0.2548296
        %v1075 = vadd.f32 %v1043, 0.2548296
        %v1076 = vadd.f32 %v1044, 0.2548296
        %v1077 = vadd.f32 %v1045, 0.2548296
        %v1078 = vadd.f32 %v1046, 0.2548296
        %v1079 = vadd.f32 %v1047, 0.2548296
        %v1080 = vadd.f32 %v1048, 0.2548296
        %v1081 = vadd.f32 %v1049, 0.2548296
        %v1082 = vadd.f32 %v1050, 0.2548296
        %v1083 = vadd.f32 %v1051, 0.2548296
        %v1084 = vadd.f32 %v1052, 0.2548296
        %v1085 = vadd.f32 %v1053, 0.2548296
        %v1086 = vadd.f32 %v1054, 0.2548296
        %v1087 = vadd.f32 %v1055, 0.2548296
        %v1088 = vadd.f32 %v1056, 0.2548296
        %v1089 = vadd.f32 %v1057, 0.2548296
        %v1090 = vadd.f32 %v1058, 0.2548296
        %v1091 = vadd.f32 %v1059, 0.2548296
        %v1092 = vmul.f32 %v1060, %v773
        %v1093 = vmul.f32 %v1061, %v775
        %v1094 = vmul.f32 %v1062, %v777
        %v1095 = vmul.f32 %v1063, %v779
        %v1096 = vmul.f32 %v1064, %v781
        %v1097 = vmul.f32 %v1065, %v783
        %v1098 = vmul.f32 %v1066, %v785
        %v1099 = vmul.f32 %v1067, %v787
        %v1100 = vmul.f32 %v1068, %v789
        %v1101 = vmul.f32 %v1069, %v791
        %v1102 = vmul.f32 %v1070, %v793
        %v1103 = vmul.f32 %v1071, %v795
        %v1104 = vmul.f32 %v1072, %v797
        %v1105 = vmul.f32 %v1073, %v799
        %v1106 = vmul.f32 %v1074, %v801
        %v1107 = vmul.f32 %v1075, %v803
        %v1108 = vmul.f32 %v1076, %v805
        %v1109 = vmul.f32 %v1077, %v807
        %v1110 = vmul.f32 %v1078, %v809
        %v1111 = vmul.f32 %v1079, %v811
        %v1112 = vmul.f32 %v1080, %v813
        %v1113 = vmul.f32 %v1081, %v815
        %v1114 = vmul.f32 %v1082, %v817
        %v1115 = vmul.f32 %v1083, %v819
        %v1116 = vmul.f32 %v1084, %v821
        %v1117 = vmul.f32 %v1085, %v823
        %v1118 = vmul.f32 %v1086, %v825
        %v1119 = vmul.f32 %v1087, %v827
        %v1120 = vmul.f32 %v1088, %v829
        %v1121 = vmul.f32 %v1089, %v831
        %v1122 = vmul.f32 %v1090, %v833
        %v1123 = vmul.f32 %v1091, %v835
        %v1124 = vmul.f32 %v676, %v676
        %v1125 = vmul.f32 %v677, %v677
        %v1126 = vmul.f32 %v678, %v678
        %v1127 = vmul.f32 %v679, %v679
        %v1128 = vmul.f32 %v680, %v680
        %v1129 = vmul.f32 %v681, %v681
        %v1130 = vmul.f32 %v682, %v682
        %v1131 = vmul.f32 %v683, %v683
        %v1132 = vmul.f32 %v684, %v684
        %v1133 = vmul.f32 %v685, %v685
        %v1134 = vmul.f32 %v686, %v686
        %v1135 = vmul.f32 %v687, %v687
        %v1136 = vmul.f32 %v688, %v688
        %v1137 = vmul.f32 %v689, %v689
        %v1138 = vmul.f32 %v690, %v690
        %v1139 = vmul.f32 %v691, %v691
        %v1140 = vmul.f32 %v692, %v692
        %v1141 = vmul.f32 %v693, %v693
        %v1142 = vmul.f32 %v694, %v694
        %v1143 = vmul.f32 %v695, %v695
        %v1144 = vmul.f32 %v696, %v696
        %v1145 = vmul.f32 %v697, %v697
        %v1146 = vmul.f32 %v698, %v698
        %v1147 = vmul.f32 %v699, %v699
        %v1148 = vmul.f32 %v700, %v700
        %v1149 = vmul.f32 %v701, %v701
        %v1150 = vmul.f32 %v702, %v702
        %v1151 = vmul.f32 %v703, %v703
        %v1152 = vmul.f32 %v704, %v704
        %v1153 = vmul.f32 %v705, %v705
        %v1154 = vmul.f32 %v706, %v706
        %v1155 = vmul.f32 %v707, %v707
        %v1156 = vsub.f32 0.0, %v1124
        %v1157 = vsub.f32 0.0, %v1125
        %v1158 = vsub.f32 0.0, %v1126
        %v1159 = vsub.f32 0.0, %v1127
        %v1160 = vsub.f32 0.0, %v1128
        %v1161 = vsub.f32 0.0, %v1129
        %v1162 = vsub.f32 0.0, %v1130
        %v1163 = vsub.f32 0.0, %v1131
        %v1164 = vsub.f32 0.0, %v1132
        %v1165 = vsub.f32 0.0, %v1133
        %v1166 = vsub.f32 0.0, %v1134
        %v1167 = vsub.f32 0.0, %v1135
        %v1168 = vsub.f32 0.0, %v1136
        %v1169 = vsub.f32 0.0, %v1137
        %v1170 = vsub.f32 0.0, %v1138
        %v1171 = vsub.f32 0.0, %v1139
        %v1172 = vsub.f32 0.0, %v1140
        %v1173 = vsub.f32 0.0, %v1141
        %v1174 = vsub.f32 0.0, %v1142
        %v1175 = vsub.f32 0.0, %v1143
        %v1176 = vsub.f32 0.0, %v1144
        %v1177 = vsub.f32 0.0, %v1145
        %v1178 = vsub.f32 0.0, %v1146
        %v1179 = vsub.f32 0.0, %v1147
        %v1180 = vsub.f32 0.0, %v1148
        %v1181 = vsub.f32 0.0, %v1149
        %v1182 = vsub.f32 0.0, %v1150
        %v1183 = vsub.f32 0.0, %v1151
        %v1184 = vsub.f32 0.0, %v1152
        %v1185 = vsub.f32 0.0, %v1153
        %v1186 = vsub.f32 0.0, %v1154
        %v1187 = vsub.f32 0.0, %v1155
        %v1188 = vmul.f32 %v1156, 1.442695
        %v1189 = vpow.pop %v1188
        %v1190 = vmul.f32 %v1157, 1.442695
        %v1191 = vpow.pop %v1190
        %v1192 = vmul.f32 %v1158, 1.442695
        %v1193 = vpow.pop %v1192
        %v1194 = vmul.f32 %v1159, 1.442695
        %v1195 = vpow.pop %v1194
        %v1196 = vmul.f32 %v1160, 1.442695
        %v1197 = vpow.pop %v1196
        %v1198 = vmul.f32 %v1161, 1.442695
        %v1199 = vpow.pop %v1198
        %v1200 = vmul.f32 %v1162, 1.442695
        %v1201 = vpow.pop %v1200
        %v1202 = vmul.f32 %v1163, 1.442695
        %v1203 = vpow.pop %v1202
        %v1204 = vmul.f32 %v1164, 1.442695
        %v1205 = vpow.pop %v1204
        %v1206 = vmul.f32 %v1165, 1.442695
        %v1207 = vpow.pop %v1206
        %v1208 = vmul.f32 %v1166, 1.442695
        %v1209 = vpow.pop %v1208
        %v1210 = vmul.f32 %v1167, 1.442695
        %v1211 = vpow.pop %v1210
        %v1212 = vmul.f32 %v1168, 1.442695
        %v1213 = vpow.pop %v1212
        %v1214 = vmul.f32 %v1169, 1.442695
        %v1215 = vpow.pop %v1214
        %v1216 = vmul.f32 %v1170, 1.442695
        %v1217 = vpow.pop %v1216
        %v1218 = vmul.f32 %v1171, 1.442695
        %v1219 = vpow.pop %v1218
        %v1220 = vmul.f32 %v1172, 1.442695
        %v1221 = vpow.pop %v1220
        %v1222 = vmul.f32 %v1173, 1.442695
        %v1223 = vpow.pop %v1222
        %v1224 = vmul.f32 %v1174, 1.442695
        %v1225 = vpow.pop %v1224
        %v1226 = vmul.f32 %v1175, 1.442695
        %v1227 = vpow.pop %v1226
        %v1228 = vmul.f32 %v1176, 1.442695
        %v1229 = vpow.pop %v1228
        %v1230 = vmul.f32 %v1177, 1.442695
        %v1231 = vpow.pop %v1230
        %v1232 = vmul.f32 %v1178, 1.442695
        %v1233 = vpow.pop %v1232
        %v1234 = vmul.f32 %v1179, 1.442695
        %v1235 = vpow.pop %v1234
        %v1236 = vmul.f32 %v1180, 1.442695
        %v1237 = vpow.pop %v1236
        %v1238 = vmul.f32 %v1181, 1.442695
        %v1239 = vpow.pop %v1238
        %v1240 = vmul.f32 %v1182, 1.442695
        %v1241 = vpow.pop %v1240
        %v1242 = vmul.f32 %v1183, 1.442695
        %v1243 = vpow.pop %v1242
        %v1244 = vmul.f32 %v1184, 1.442695
        %v1245 = vpow.pop %v1244
        %v1246 = vmul.f32 %v1185, 1.442695
        %v1247 = vpow.pop %v1246
        %v1248 = vmul.f32 %v1186, 1.442695
        %v1249 = vpow.pop %v1248
        %v1250 = vmul.f32 %v1187, 1.442695
        %v1251 = vpow.pop %v1250
        %v1252 = vmul.f32 %v1092, %v1189
        %v1253 = vmul.f32 %v1093, %v1191
        %v1254 = vmul.f32 %v1094, %v1193
        %v1255 = vmul.f32 %v1095, %v1195
        %v1256 = vmul.f32 %v1096, %v1197
        %v1257 = vmul.f32 %v1097, %v1199
        %v1258 = vmul.f32 %v1098, %v1201
        %v1259 = vmul.f32 %v1099, %v1203
        %v1260 = vmul.f32 %v1100, %v1205
        %v1261 = vmul.f32 %v1101, %v1207
        %v1262 = vmul.f32 %v1102, %v1209
        %v1263 = vmul.f32 %v1103, %v1211
        %v1264 = vmul.f32 %v1104, %v1213
        %v1265 = vmul.f32 %v1105, %v1215
        %v1266 = vmul.f32 %v1106, %v1217
        %v1267 = vmul.f32 %v1107, %v1219
        %v1268 = vmul.f32 %v1108, %v1221
        %v1269 = vmul.f32 %v1109, %v1223
        %v1270 = vmul.f32 %v1110, %v1225
        %v1271 = vmul.f32 %v1111, %v1227
        %v1272 = vmul.f32 %v1112, %v1229
        %v1273 = vmul.f32 %v1113, %v1231
        %v1274 = vmul.f32 %v1114, %v1233
        %v1275 = vmul.f32 %v1115, %v1235
        %v1276 = vmul.f32 %v1116, %v1237
        %v1277 = vmul.f32 %v1117, %v1239
        %v1278 = vmul.f32 %v1118, %v1241
        %v1279 = vmul.f32 %v1119, %v1243
        %v1280 = vmul.f32 %v1120, %v1245
        %v1281 = vmul.f32 %v1121, %v1247
        %v1282 = vmul.f32 %v1122, %v1249
        %v1283 = vmul.f32 %v1123, %v1251
        %v1284 = vsub.f32 1.0, %v1252
        %v1285 = vsub.f32 1.0, %v1253
        %v1286 = vsub.f32 1.0, %v1254
        %v1287 = vsub.f32 1.0, %v1255
        %v1288 = vsub.f32 1.0, %v1256
        %v1289 = vsub.f32 1.0, %v1257
        %v1290 = vsub.f32 1.0, %v1258
        %v1291 = vsub.f32 1.0, %v1259
        %v1292 = vsub.f32 1.0, %v1260
        %v1293 = vsub.f32 1.0, %v1261
        %v1294 = vsub.f32 1.0, %v1262
        %v1295 = vsub.f32 1.0, %v1263
        %v1296 = vsub.f32 1.0, %v1264
        %v1297 = vsub.f32 1.0, %v1265
        %v1298 = vsub.f32 1.0, %v1266
        %v1299 = vsub.f32 1.0, %v1267
        %v1300 = vsub.f32 1.0, %v1268
        %v1301 = vsub.f32 1.0, %v1269
        %v1302 = vsub.f32 1.0, %v1270
        %v1303 = vsub.f32 1.0, %v1271
        %v1304 = vsub.f32 1.0, %v1272
        %v1305 = vsub.f32 1.0, %v1273
        %v1306 = vsub.f32 1.0, %v1274
        %v1307 = vsub.f32 1.0, %v1275
        %v1308 = vsub.f32 1.0, %v1276
        %v1309 = vsub.f32 1.0, %v1277
        %v1310 = vsub.f32 1.0, %v1278
        %v1311 = vsub.f32 1.0, %v1279
        %v1312 = vsub.f32 1.0, %v1280
        %v1313 = vsub.f32 1.0, %v1281
        %v1314 = vsub.f32 1.0, %v1282
        %v1315 = vsub.f32 1.0, %v1283
        %vm1316 = vcmp.lt.f32.partialorder %v644, 0.0
        %vm1317 = vcmp.lt.f32.partialorder %v645, 0.0
        %vm1318 = vcmp.lt.f32.partialorder %v646, 0.0
        %vm1319 = vcmp.lt.f32.partialorder %v647, 0.0
        %vm1320 = vcmp.lt.f32.partialorder %v648, 0.0
        %vm1321 = vcmp.lt.f32.partialorder %v649, 0.0
        %vm1322 = vcmp.lt.f32.partialorder %v650, 0.0
        %vm1323 = vcmp.lt.f32.partialorder %v651, 0.0
        %vm1324 = vcmp.lt.f32.partialorder %v652, 0.0
        %vm1325 = vcmp.lt.f32.partialorder %v653, 0.0
        %vm1326 = vcmp.lt.f32.partialorder %v654, 0.0
        %vm1327 = vcmp.lt.f32.partialorder %v655, 0.0
        %vm1328 = vcmp.lt.f32.partialorder %v656, 0.0
        %vm1329 = vcmp.lt.f32.partialorder %v657, 0.0
        %vm1330 = vcmp.lt.f32.partialorder %v658, 0.0
        %vm1331 = vcmp.lt.f32.partialorder %v659, 0.0
        %vm1332 = vcmp.lt.f32.partialorder %v660, 0.0
        %vm1333 = vcmp.lt.f32.partialorder %v661, 0.0
        %vm1334 = vcmp.lt.f32.partialorder %v662, 0.0
        %vm1335 = vcmp.lt.f32.partialorder %v663, 0.0
        %vm1336 = vcmp.lt.f32.partialorder %v664, 0.0
        %vm1337 = vcmp.lt.f32.partialorder %v665, 0.0
        %vm1338 = vcmp.lt.f32.partialorder %v666, 0.0
        %vm1339 = vcmp.lt.f32.partialorder %v667, 0.0
        %vm1340 = vcmp.lt.f32.partialorder %v668, 0.0
        %vm1341 = vcmp.lt.f32.partialorder %v669, 0.0
        %vm1342 = vcmp.lt.f32.partialorder %v670, 0.0
        %vm1343 = vcmp.lt.f32.partialorder %v671, 0.0
        %vm1344 = vcmp.lt.f32.partialorder %v672, 0.0
        %vm1345 = vcmp.lt.f32.partialorder %v673, 0.0
        %vm1346 = vcmp.lt.f32.partialorder %v674, 0.0
        %vm1347 = vcmp.lt.f32.partialorder %v675, 0.0
        %v1348 = vsub.f32 0.0, %v1284
        %v1349 = vsub.f32 0.0, %v1285
        %v1350 = vsub.f32 0.0, %v1286
        %v1351 = vsub.f32 0.0, %v1287
        %v1352 = vsub.f32 0.0, %v1288
        %v1353 = vsub.f32 0.0, %v1289
        %v1354 = vsub.f32 0.0, %v1290
        %v1355 = vsub.f32 0.0, %v1291
        %v1356 = vsub.f32 0.0, %v1292
        %v1357 = vsub.f32 0.0, %v1293
        %v1358 = vsub.f32 0.0, %v1294
        %v1359 = vsub.f32 0.0, %v1295
        %v1360 = vsub.f32 0.0, %v1296
        %v1361 = vsub.f32 0.0, %v1297
        %v1362 = vsub.f32 0.0, %v1298
        %v1363 = vsub.f32 0.0, %v1299
        %v1364 = vsub.f32 0.0, %v1300
        %v1365 = vsub.f32 0.0, %v1301
        %v1366 = vsub.f32 0.0, %v1302
        %v1367 = vsub.f32 0.0, %v1303
        %v1368 = vsub.f32 0.0, %v1304
        %v1369 = vsub.f32 0.0, %v1305
        %v1370 = vsub.f32 0.0, %v1306
        %v1371 = vsub.f32 0.0, %v1307
        %v1372 = vsub.f32 0.0, %v1308
        %v1373 = vsub.f32 0.0, %v1309
        %v1374 = vsub.f32 0.0, %v1310
        %v1375 = vsub.f32 0.0, %v1311
        %v1376 = vsub.f32 0.0, %v1312
        %v1377 = vsub.f32 0.0, %v1313
        %v1378 = vsub.f32 0.0, %v1314
        %v1379 = vsub.f32 0.0, %v1315
        %v1380 = vsel %vm1316, %v1348, %v1284
        %v1381 = vsel %vm1317, %v1349, %v1285
        %v1382 = vsel %vm1318, %v1350, %v1286
        %v1383 = vsel %vm1319, %v1351, %v1287
        %v1384 = vsel %vm1320, %v1352, %v1288
        %v1385 = vsel %vm1321, %v1353, %v1289
        %v1386 = vsel %vm1322, %v1354, %v1290
        %v1387 = vsel %vm1323, %v1355, %v1291
        %v1388 = vsel %vm1324, %v1356, %v1292
        %v1389 = vsel %vm1325, %v1357, %v1293
        %v1390 = vsel %vm1326, %v1358, %v1294
        %v1391 = vsel %vm1327, %v1359, %v1295
        %v1392 = vsel %vm1328, %v1360, %v1296
        %v1393 = vsel %vm1329, %v1361, %v1297
        %v1394 = vsel %vm1330, %v1362, %v1298
        %v1395 = vsel %vm1331, %v1363, %v1299
        %v1396 = vsel %vm1332, %v1364, %v1300
        %v1397 = vsel %vm1333, %v1365, %v1301
        %v1398 = vsel %vm1334, %v1366, %v1302
        %v1399 = vsel %vm1335, %v1367, %v1303
        %v1400 = vsel %vm1336, %v1368, %v1304
        %v1401 = vsel %vm1337, %v1369, %v1305
        %v1402 = vsel %vm1338, %v1370, %v1306
        %v1403 = vsel %vm1339, %v1371, %v1307
        %v1404 = vsel %vm1340, %v1372, %v1308
        %v1405 = vsel %vm1341, %v1373, %v1309
        %v1406 = vsel %vm1342, %v1374, %v1310
        %v1407 = vsel %vm1343, %v1375, %v1311
        %v1408 = vsel %vm1344, %v1376, %v1312
        %v1409 = vsel %vm1345, %v1377, %v1313
        %v1410 = vsel %vm1346, %v1378, %v1314
        %v1411 = vsel %vm1347, %v1379, %v1315
        %v1412 = vadd.f32 %v1380, 1.0
        %v1413 = vadd.f32 %v1381, 1.0
        %v1414 = vadd.f32 %v1382, 1.0
        %v1415 = vadd.f32 %v1383, 1.0
        %v1416 = vadd.f32 %v1384, 1.0
        %v1417 = vadd.f32 %v1385, 1.0
        %v1418 = vadd.f32 %v1386, 1.0
        %v1419 = vadd.f32 %v1387, 1.0
        %v1420 = vadd.f32 %v1388, 1.0
        %v1421 = vadd.f32 %v1389, 1.0
        %v1422 = vadd.f32 %v1390, 1.0
        %v1423 = vadd.f32 %v1391, 1.0
        %v1424 = vadd.f32 %v1392, 1.0
        %v1425 = vadd.f32 %v1393, 1.0
        %v1426 = vadd.f32 %v1394, 1.0
        %v1427 = vadd.f32 %v1395, 1.0
        %v1428 = vadd.f32 %v1396, 1.0
        %v1429 = vadd.f32 %v1397, 1.0
        %v1430 = vadd.f32 %v1398, 1.0
        %v1431 = vadd.f32 %v1399, 1.0
        %v1432 = vadd.f32 %v1400, 1.0
        %v1433 = vadd.f32 %v1401, 1.0
        %v1434 = vadd.f32 %v1402, 1.0
        %v1435 = vadd.f32 %v1403, 1.0
        %v1436 = vadd.f32 %v1404, 1.0
        %v1437 = vadd.f32 %v1405, 1.0
        %v1438 = vadd.f32 %v1406, 1.0
        %v1439 = vadd.f32 %v1407, 1.0
        %v1440 = vadd.f32 %v1408, 1.0
        %v1441 = vadd.f32 %v1409, 1.0
        %v1442 = vadd.f32 %v1410, 1.0
        %v1443 = vadd.f32 %v1411, 1.0
        %v1444 = vmul.f32 %v612, %v1412
        %v1445 = vmul.f32 %v613, %v1413
        %v1446 = vmul.f32 %v614, %v1414
        %v1447 = vmul.f32 %v615, %v1415
        %v1448 = vmul.f32 %v616, %v1416
        %v1449 = vmul.f32 %v617, %v1417
        %v1450 = vmul.f32 %v618, %v1418
        %v1451 = vmul.f32 %v619, %v1419
        %v1452 = vmul.f32 %v620, %v1420
        %v1453 = vmul.f32 %v621, %v1421
        %v1454 = vmul.f32 %v622, %v1422
        %v1455 = vmul.f32 %v623, %v1423
        %v1456 = vmul.f32 %v624, %v1424
        %v1457 = vmul.f32 %v625, %v1425
        %v1458 = vmul.f32 %v626, %v1426
        %v1459 = vmul.f32 %v627, %v1427
        %v1460 = vmul.f32 %v628, %v1428
        %v1461 = vmul.f32 %v629, %v1429
        %v1462 = vmul.f32 %v630, %v1430
        %v1463 = vmul.f32 %v631, %v1431
        %v1464 = vmul.f32 %v632, %v1432
        %v1465 = vmul.f32 %v633, %v1433
        %v1466 = vmul.f32 %v634, %v1434
        %v1467 = vmul.f32 %v635, %v1435
        %v1468 = vmul.f32 %v636, %v1436
        %v1469 = vmul.f32 %v637, %v1437
        %v1470 = vmul.f32 %v638, %v1438
        %v1471 = vmul.f32 %v639, %v1439
        %v1472 = vmul.f32 %v640, %v1440
        %v1473 = vmul.f32 %v641, %v1441
        %v1474 = vmul.f32 %v642, %v1442
        %v1475 = vmul.f32 %v643, %v1443
        %v1476 = vld [vmem:[%s3] sm:$0xff]
        %v1477 = vld [vmem:[%s3 + $0x8] sm:$0xff]
        %v1478 = vld [vmem:[%s3 + $0x10] sm:$0xff]
        %v1479 = vld [vmem:[%s3 + $0x18] sm:$0xff]
        %v1480 = vld [vmem:[%s3 + $0x20] sm:$0xff]
        %v1481 = vld [vmem:[%s3 + $0x28] sm:$0xff]
        %v1482 = vld [vmem:[%s3 + $0x30] sm:$0xff]
        %v1483 = vld [vmem:[%s3 + $0x38] sm:$0xff]
        %v1484 = vld [vmem:[%s4] sm:$0xff]
        %v1485 = vld [vmem:[%s4 + $0x8] sm:$0xff]
        %v1486 = vld [vmem:[%s4 + $0x10] sm:$0xff]
        %v1487 = vld [vmem:[%s4 + $0x18] sm:$0xff]
        %v1488 = vld [vmem:[%s4 + $0x20] sm:$0xff]
        %v1489 = vld [vmem:[%s4 + $0x28] sm:$0xff]
        %v1490 = vld [vmem:[%s4 + $0x30] sm:$0xff]
        %v1491 = vld [vmem:[%s4 + $0x38] sm:$0xff]
        %1493 = vset.pattern.permute.xlu0 0
        %1494 = vperm.xlu0 %1493, %v1484
        %v1495 = vpop.permute.xlu0 %1494
        %1498 = vset.pattern.permute.xlu0 0
        %1499 = vperm.xlu0 %1498, %v1485
        %v1500 = vpop.permute.xlu0 %1499
        %1503 = vset.pattern.permute.xlu0 0
        %1504 = vperm.xlu0 %1503, %v1486
        %v1505 = vpop.permute.xlu0 %1504
        %1508 = vset.pattern.permute.xlu0 0
        %1509 = vperm.xlu0 %1508, %v1487
        %v1510 = vpop.permute.xlu0 %1509
        %1513 = vset.pattern.permute.xlu0 0
        %1514 = vperm.xlu0 %1513, %v1488
        %v1515 = vpop.permute.xlu0 %1514
        %1518 = vset.pattern.permute.xlu0 0
        %1519 = vperm.xlu0 %1518, %v1489
        %v1520 = vpop.permute.xlu0 %1519
        %1523 = vset.pattern.permute.xlu0 0
        %1524 = vperm.xlu0 %1523, %v1490
        %v1525 = vpop.permute.xlu0 %1524
        %1528 = vset.pattern.permute.xlu0 0
        %1529 = vperm.xlu0 %1528, %v1491
        %v1530 = vpop.permute.xlu0 %1529
        %vm1532 = vcmask 523264
        %v1534 = vsel %vm1532, %v1476, 0
        %v1537 = vsel %vm1532, %v1477, 0
        %v1540 = vsel %vm1532, %v1478, 0
        %v1543 = vsel %vm1532, %v1479, 0
        %v1546 = vsel %vm1532, %v1480, 0
        %v1549 = vsel %vm1532, %v1481, 0
        %v1552 = vsel %vm1532, %v1482, 0
        %v1555 = vsel %vm1532, %v1483, 0
        %1557 = vmatprep.subr.mxu0 %v1445
        %1558 = vmatpush1.msra.mxu0 %v1444
        %1559 = vmatprep.subr.mxu0 %v1449
        %1560 = vmatpush1.msra.mxu0 %v1448
        %1561 = vmatprep.subr.mxu0 %v1453
        %1562 = vmatpush1.msra.mxu0 %v1452
        %1563 = vmatprep.subr.mxu0 %v1457
        %1564 = vmatpush1.msra.mxu0 %v1456
        %1565 = vmatprep.subr.mxu0 %v1461
        %1566 = vmatpush1.msra.mxu0 %v1460
        %1567 = vmatprep.subr.mxu0 %v1465
        %1568 = vmatpush1.msra.mxu0 %v1464
        %1569 = vmatprep.subr.mxu0 %v1469
        %1570 = vmatpush1.msra.mxu0 %v1468
        %1571 = vmatprep.subr.mxu0 %v1473
        %1572 = vmatpush1.msra.mxu0 %v1472
        %1573 = vmatprep.subr.mxu0 0.0
        %1574 = vmatpush1.msra.mxu0 0.0
        %1575 = vmatprep.subr.mxu0 0.0
        %1576 = vmatpush1.msra.mxu0 0.0
        %1577 = vmatprep.subr.mxu0 0.0
        %1578 = vmatpush1.msra.mxu0 0.0
        %1579 = vmatprep.subr.mxu0 0.0
        %1580 = vmatpush1.msra.mxu0 0.0
        %1581 = vmatprep.subr.mxu0 0.0
        %1582 = vmatpush1.msra.mxu0 0.0
        %1583 = vmatprep.subr.mxu0 0.0
        %1584 = vmatpush1.msra.mxu0 0.0
        %1585 = vmatprep.subr.mxu0 0.0
        %1586 = vmatpush1.msra.mxu0 0.0
        %1587 = vmatprep.subr.mxu0 0.0
        %1588 = vmatpush1.msra.mxu0 0.0
        %1589 = vmatprep.subr.mxu0 0.0
        %1590 = vmatpush1.msra.mxu0 0.0
        %1591 = vmatprep.subr.mxu0 0.0
        %1592 = vmatpush1.msra.mxu0 0.0
        %1593 = vmatprep.subr.mxu0 0.0
        %1594 = vmatpush1.msra.mxu0 0.0
        %1595 = vmatprep.subr.mxu0 0.0
        %1596 = vmatpush1.msra.mxu0 0.0
        %1597 = vmatprep.subr.mxu0 0.0
        %1598 = vmatpush1.msra.mxu0 0.0
        %1599 = vmatprep.subr.mxu0 0.0
        %1600 = vmatpush1.msra.mxu0 0.0
        %1601 = vmatprep.subr.mxu0 0.0
        %1602 = vmatpush1.msra.mxu0 0.0
        %1603 = vmatprep.subr.mxu0 0.0
        %1604 = vmatpush1.msra.mxu0 0.0
        %1605 = vmatprep.subr.mxu0 0.0
        %1606 = vmatpush1.msra.mxu0 0.0
        %1607 = vmatprep.subr.mxu0 0.0
        %1608 = vmatpush1.msra.mxu0 0.0
        %1609 = vmatprep.subr.mxu0 0.0
        %1610 = vmatpush1.msra.mxu0 0.0
        %1611 = vmatprep.subr.mxu0 0.0
        %1612 = vmatpush1.msra.mxu0 0.0
        %1613 = vmatprep.subr.mxu0 0.0
        %1614 = vmatpush1.msra.mxu0 0.0
        %1615 = vmatprep.subr.mxu0 0.0
        %1616 = vmatpush1.msra.mxu0 0.0
        %1617 = vmatprep.subr.mxu0 0.0
        %1618 = vmatpush1.msra.mxu0 0.0
        %1619 = vmatprep.subr.mxu0 0.0
        %1620 = vmatpush1.msra.mxu0 0.0
        %1621 = vmatprep.mubr.f32.mxu0 0.0
        %1622 = vmatmul.mubr.f32.gmra.mrb[0].mxu0 %v1534
        %v1623 = vpop.f32.mrb[0].mxu0
        %v1624 = vadd.f32 %v1495, %v1623
        %v1625 = vpop.f32.mrb[0].mxu0
        %v1626 = vadd.f32 %v1495, %v1625
        %1627 = vmatprep.mubr.f32.mxu0 0.0
        %1628 = vmatmul.mubr.f32.gmra.mrb[0].mxu0 %v1537
        %v1629 = vpop.f32.mrb[0].mxu0
        %v1630 = vadd.f32 %v1500, %v1629
        %v1631 = vpop.f32.mrb[0].mxu0
        %v1632 = vadd.f32 %v1500, %v1631
        %1633 = vmatprep.mubr.f32.mxu0 0.0
        %1634 = vmatmul.mubr.f32.gmra.mrb[0].mxu0 %v1540
        %v1635 = vpop.f32.mrb[0].mxu0
        %v1636 = vadd.f32 %v1505, %v1635
        %v1637 = vpop.f32.mrb[0].mxu0
        %v1638 = vadd.f32 %v1505, %v1637
        %1639 = vmatprep.mubr.f32.mxu0 0.0
        %1640 = vmatmul.mubr.f32.gmra.mrb[0].mxu0 %v1543
        %v1641 = vpop.f32.mrb[0].mxu0
        %v1642 = vadd.f32 %v1510, %v1641
        %v1643 = vpop.f32.mrb[0].mxu0
        %v1644 = vadd.f32 %v1510, %v1643
        %1645 = vmatprep.mubr.f32.mxu0 0.0
        %1646 = vmatmul.mubr.f32.gmra.mrb[0].mxu0 %v1546
        %v1647 = vpop.f32.mrb[0].mxu0
        %v1648 = vadd.f32 %v1515, %v1647
        %v1649 = vpop.f32.mrb[0].mxu0
        %v1650 = vadd.f32 %v1515, %v1649
        %1651 = vmatprep.mubr.f32.mxu0 0.0
        %1652 = vmatmul.mubr.f32.gmra.mrb[0].mxu0 %v1549
        %v1653 = vpop.f32.mrb[0].mxu0
        %v1654 = vadd.f32 %v1520, %v1653
        %v1655 = vpop.f32.mrb[0].mxu0
        %v1656 = vadd.f32 %v1520, %v1655
        %1657 = vmatprep.mubr.f32.mxu0 0.0
        %1658 = vmatmul.mubr.f32.gmra.mrb[0].mxu0 %v1552
        %v1659 = vpop.f32.mrb[0].mxu0
        %v1660 = vadd.f32 %v1525, %v1659
        %v1661 = vpop.f32.mrb[0].mxu0
        %v1662 = vadd.f32 %v1525, %v1661
        %1663 = vmatprep.mubr.f32.mxu0 0.0
        %1664 = vmatmul.mubr.f32.gmra.mrb[0].mxu0 %v1555
        %v1665 = vpop.f32.mrb[0].mxu0
        %v1666 = vadd.f32 %v1530, %v1665
        %v1667 = vpop.f32.mrb[0].mxu0
        %v1668 = vadd.f32 %v1530, %v1667
        %1669 = vdwg.mxu0
        %1670 = vmatprep.subr.mxu0 %v1447
        %1671 = vmatpush1.msra.mxu0 %v1446
        %1672 = vmatprep.subr.mxu0 %v1451
        %1673 = vmatpush1.msra.mxu0 %v1450
        %1674 = vmatprep.subr.mxu0 %v1455
        %1675 = vmatpush1.msra.mxu0 %v1454
        %1676 = vmatprep.subr.mxu0 %v1459
        %1677 = vmatpush1.msra.mxu0 %v1458
        %1678 = vmatprep.subr.mxu0 %v1463
        %1679 = vmatpush1.msra.mxu0 %v1462
        %1680 = vmatprep.subr.mxu0 %v1467
        %1681 = vmatpush1.msra.mxu0 %v1466
        %1682 = vmatprep.subr.mxu0 %v1471
        %1683 = vmatpush1.msra.mxu0 %v1470
        %1684 = vmatprep.subr.mxu0 %v1475
        %1685 = vmatpush1.msra.mxu0 %v1474
        %1686 = vmatprep.subr.mxu0 0.0
        %1687 = vmatpush1.msra.mxu0 0.0
        %1688 = vmatprep.subr.mxu0 0.0
        %1689 = vmatpush1.msra.mxu0 0.0
        %1690 = vmatprep.subr.mxu0 0.0
        %1691 = vmatpush1.msra.mxu0 0.0
        %1692 = vmatprep.subr.mxu0 0.0
        %1693 = vmatpush1.msra.mxu0 0.0
        %1694 = vmatprep.subr.mxu0 0.0
        %1695 = vmatpush1.msra.mxu0 0.0
        %1696 = vmatprep.subr.mxu0 0.0
        %1697 = vmatpush1.msra.mxu0 0.0
        %1698 = vmatprep.subr.mxu0 0.0
        %1699 = vmatpush1.msra.mxu0 0.0
        %1700 = vmatprep.subr.mxu0 0.0
        %1701 = vmatpush1.msra.mxu0 0.0
        %1702 = vmatprep.subr.mxu0 0.0
        %1703 = vmatpush1.msra.mxu0 0.0
        %1704 = vmatprep.subr.mxu0 0.0
        %1705 = vmatpush1.msra.mxu0 0.0
        %1706 = vmatprep.subr.mxu0 0.0
        %1707 = vmatpush1.msra.mxu0 0.0
        %1708 = vmatprep.subr.mxu0 0.0
        %1709 = vmatpush1.msra.mxu0 0.0
        %1710 = vmatprep.subr.mxu0 0.0
        %1711 = vmatpush1.msra.mxu0 0.0
        %1712 = vmatprep.subr.mxu0 0.0
        %1713 = vmatpush1.msra.mxu0 0.0
        %1714 = vmatprep.subr.mxu0 0.0
        %1715 = vmatpush1.msra.mxu0 0.0
        %1716 = vmatprep.subr.mxu0 0.0
        %1717 = vmatpush1.msra.mxu0 0.0
        %1718 = vmatprep.subr.mxu0 0.0
        %1719 = vmatpush1.msra.mxu0 0.0
        %1720 = vmatprep.subr.mxu0 0.0
        %1721 = vmatpush1.msra.mxu0 0.0
        %1722 = vmatprep.subr.mxu0 0.0
        %1723 = vmatpush1.msra.mxu0 0.0
        %1724 = vmatprep.subr.mxu0 0.0
        %1725 = vmatpush1.msra.mxu0 0.0
        %1726 = vmatprep.subr.mxu0 0.0
        %1727 = vmatpush1.msra.mxu0 0.0
        %1728 = vmatprep.subr.mxu0 0.0
        %1729 = vmatpush1.msra.mxu0 0.0
        %1730 = vmatprep.subr.mxu0 0.0
        %1731 = vmatpush1.msra.mxu0 0.0
        %1732 = vmatprep.subr.mxu0 0.0
        %1733 = vmatpush1.msra.mxu0 0.0
        %1734 = vmatprep.mubr.f32.mxu0 0.0
        %1735 = vmatmul.mubr.f32.gmra.mrb[0].mxu0 %v1534
        %v1736 = vpop.f32.mrb[0].mxu0
        %v1737 = vadd.f32 %v1495, %v1736
        %v1738 = vpop.f32.mrb[0].mxu0
        %v1739 = vadd.f32 %v1495, %v1738
        %1740 = vmatprep.mubr.f32.mxu0 0.0
        %1741 = vmatmul.mubr.f32.gmra.mrb[0].mxu0 %v1537
        %v1742 = vpop.f32.mrb[0].mxu0
        %v1743 = vadd.f32 %v1500, %v1742
        %v1744 = vpop.f32.mrb[0].mxu0
        %v1745 = vadd.f32 %v1500, %v1744
        %1746 = vmatprep.mubr.f32.mxu0 0.0
        %1747 = vmatmul.mubr.f32.gmra.mrb[0].mxu0 %v1540
        %v1748 = vpop.f32.mrb[0].mxu0
        %v1749 = vadd.f32 %v1505, %v1748
        %v1750 = vpop.f32.mrb[0].mxu0
        %v1751 = vadd.f32 %v1505, %v1750
        %1752 = vmatprep.mubr.f32.mxu0 0.0
        %1753 = vmatmul.mubr.f32.gmra.mrb[0].mxu0 %v1543
        %v1754 = vpop.f32.mrb[0].mxu0
        %v1755 = vadd.f32 %v1510, %v1754
        %v1756 = vpop.f32.mrb[0].mxu0
        %v1757 = vadd.f32 %v1510, %v1756
        %1758 = vmatprep.mubr.f32.mxu0 0.0
        %1759 = vmatmul.mubr.f32.gmra.mrb[0].mxu0 %v1546
        %v1760 = vpop.f32.mrb[0].mxu0
        %v1761 = vadd.f32 %v1515, %v1760
        %v1762 = vpop.f32.mrb[0].mxu0
        %v1763 = vadd.f32 %v1515, %v1762
        %1764 = vmatprep.mubr.f32.mxu0 0.0
        %1765 = vmatmul.mubr.f32.gmra.mrb[0].mxu0 %v1549
        %v1766 = vpop.f32.mrb[0].mxu0
        %v1767 = vadd.f32 %v1520, %v1766
        %v1768 = vpop.f32.mrb[0].mxu0
        %v1769 = vadd.f32 %v1520, %v1768
        %1770 = vmatprep.mubr.f32.mxu0 0.0
        %1771 = vmatmul.mubr.f32.gmra.mrb[0].mxu0 %v1552
        %v1772 = vpop.f32.mrb[0].mxu0
        %v1773 = vadd.f32 %v1525, %v1772
        %v1774 = vpop.f32.mrb[0].mxu0
        %v1775 = vadd.f32 %v1525, %v1774
        %1776 = vmatprep.mubr.f32.mxu0 0.0
        %1777 = vmatmul.mubr.f32.gmra.mrb[0].mxu0 %v1555
        %v1778 = vpop.f32.mrb[0].mxu0
        %v1779 = vadd.f32 %v1530, %v1778
        %v1780 = vpop.f32.mrb[0].mxu0
        %v1781 = vadd.f32 %v1530, %v1780
        %1782 = vdwg.mxu0
        %v1783 = vmul.f32 %v1624, 0.5
        %v1784 = vmul.f32 %v1626, 0.5
        %v1785 = vmul.f32 %v1737, 0.5
        %v1786 = vmul.f32 %v1739, 0.5
        %v1787 = vmul.f32 %v1630, 0.5
        %v1788 = vmul.f32 %v1632, 0.5
        %v1789 = vmul.f32 %v1743, 0.5
        %v1790 = vmul.f32 %v1745, 0.5
        %v1791 = vmul.f32 %v1636, 0.5
        %v1792 = vmul.f32 %v1638, 0.5
        %v1793 = vmul.f32 %v1749, 0.5
        %v1794 = vmul.f32 %v1751, 0.5
        %v1795 = vmul.f32 %v1642, 0.5
        %v1796 = vmul.f32 %v1644, 0.5
        %v1797 = vmul.f32 %v1755, 0.5
        %v1798 = vmul.f32 %v1757, 0.5
        %v1799 = vmul.f32 %v1648, 0.5
        %v1800 = vmul.f32 %v1650, 0.5
        %v1801 = vmul.f32 %v1761, 0.5
        %v1802 = vmul.f32 %v1763, 0.5
        %v1803 = vmul.f32 %v1654, 0.5
        %v1804 = vmul.f32 %v1656, 0.5
        %v1805 = vmul.f32 %v1767, 0.5
        %v1806 = vmul.f32 %v1769, 0.5
        %v1807 = vmul.f32 %v1660, 0.5
        %v1808 = vmul.f32 %v1662, 0.5
        %v1809 = vmul.f32 %v1773, 0.5
        %v1810 = vmul.f32 %v1775, 0.5
        %v1811 = vmul.f32 %v1666, 0.5
        %v1812 = vmul.f32 %v1668, 0.5
        %v1813 = vmul.f32 %v1779, 0.5
        %v1814 = vmul.f32 %v1781, 0.5
        %v1815 = vmul.f32 %v1624, 0.70710677
        %v1816 = vmul.f32 %v1626, 0.70710677
        %v1817 = vmul.f32 %v1737, 0.70710677
        %v1818 = vmul.f32 %v1739, 0.70710677
        %v1819 = vmul.f32 %v1630, 0.70710677
        %v1820 = vmul.f32 %v1632, 0.70710677
        %v1821 = vmul.f32 %v1743, 0.70710677
        %v1822 = vmul.f32 %v1745, 0.70710677
        %v1823 = vmul.f32 %v1636, 0.70710677
        %v1824 = vmul.f32 %v1638, 0.70710677
        %v1825 = vmul.f32 %v1749, 0.70710677
        %v1826 = vmul.f32 %v1751, 0.70710677
        %v1827 = vmul.f32 %v1642, 0.70710677
        %v1828 = vmul.f32 %v1644, 0.70710677
        %v1829 = vmul.f32 %v1755, 0.70710677
        %v1830 = vmul.f32 %v1757, 0.70710677
        %v1831 = vmul.f32 %v1648, 0.70710677
        %v1832 = vmul.f32 %v1650, 0.70710677
        %v1833 = vmul.f32 %v1761, 0.70710677
        %v1834 = vmul.f32 %v1763, 0.70710677
        %v1835 = vmul.f32 %v1654, 0.70710677
        %v1836 = vmul.f32 %v1656, 0.70710677
        %v1837 = vmul.f32 %v1767, 0.70710677
        %v1838 = vmul.f32 %v1769, 0.70710677
        %v1839 = vmul.f32 %v1660, 0.70710677
        %v1840 = vmul.f32 %v1662, 0.70710677
        %v1841 = vmul.f32 %v1773, 0.70710677
        %v1842 = vmul.f32 %v1775, 0.70710677
        %v1843 = vmul.f32 %v1666, 0.70710677
        %v1844 = vmul.f32 %v1668, 0.70710677
        %v1845 = vmul.f32 %v1779, 0.70710677
        %v1846 = vmul.f32 %v1781, 0.70710677
        %v1847 = vand.u32 2147483647, %v1815
        %v1848 = vand.u32 2147483647, %v1816
        %v1849 = vand.u32 2147483647, %v1817
        %v1850 = vand.u32 2147483647, %v1818
        %v1851 = vand.u32 2147483647, %v1819
        %v1852 = vand.u32 2147483647, %v1820
        %v1853 = vand.u32 2147483647, %v1821
        %v1854 = vand.u32 2147483647, %v1822
        %v1855 = vand.u32 2147483647, %v1823
        %v1856 = vand.u32 2147483647, %v1824
        %v1857 = vand.u32 2147483647, %v1825
        %v1858 = vand.u32 2147483647, %v1826
        %v1859 = vand.u32 2147483647, %v1827
        %v1860 = vand.u32 2147483647, %v1828
        %v1861 = vand.u32 2147483647, %v1829
        %v1862 = vand.u32 2147483647, %v1830
        %v1863 = vand.u32 2147483647, %v1831
        %v1864 = vand.u32 2147483647, %v1832
        %v1865 = vand.u32 2147483647, %v1833
        %v1866 = vand.u32 2147483647, %v1834
        %v1867 = vand.u32 2147483647, %v1835
        %v1868 = vand.u32 2147483647, %v1836
        %v1869 = vand.u32 2147483647, %v1837
        %v1870 = vand.u32 2147483647, %v1838
        %v1871 = vand.u32 2147483647, %v1839
        %v1872 = vand.u32 2147483647, %v1840
        %v1873 = vand.u32 2147483647, %v1841
        %v1874 = vand.u32 2147483647, %v1842
        %v1875 = vand.u32 2147483647, %v1843
        %v1876 = vand.u32 2147483647, %v1844
        %v1877 = vand.u32 2147483647, %v1845
        %v1878 = vand.u32 2147483647, %v1846
        %v1879 = vmul.f32 %v1847, 0.3275911
        %v1880 = vmul.f32 %v1848, 0.3275911
        %v1881 = vmul.f32 %v1849, 0.3275911
        %v1882 = vmul.f32 %v1850, 0.3275911
        %v1883 = vmul.f32 %v1851, 0.3275911
        %v1884 = vmul.f32 %v1852, 0.3275911
        %v1885 = vmul.f32 %v1853, 0.3275911
        %v1886 = vmul.f32 %v1854, 0.3275911
        %v1887 = vmul.f32 %v1855, 0.3275911
        %v1888 = vmul.f32 %v1856, 0.3275911
        %v1889 = vmul.f32 %v1857, 0.3275911
        %v1890 = vmul.f32 %v1858, 0.3275911
        %v1891 = vmul.f32 %v1859, 0.3275911
        %v1892 = vmul.f32 %v1860, 0.3275911
        %v1893 = vmul.f32 %v1861, 0.3275911
        %v1894 = vmul.f32 %v1862, 0.3275911
        %v1895 = vmul.f32 %v1863, 0.3275911
        %v1896 = vmul.f32 %v1864, 0.3275911
        %v1897 = vmul.f32 %v1865, 0.3275911
        %v1898 = vmul.f32 %v1866, 0.3275911
        %v1899 = vmul.f32 %v1867, 0.3275911
        %v1900 = vmul.f32 %v1868, 0.3275911
        %v1901 = vmul.f32 %v1869, 0.3275911
        %v1902 = vmul.f32 %v1870, 0.3275911
        %v1903 = vmul.f32 %v1871, 0.3275911
        %v1904 = vmul.f32 %v1872, 0.3275911
        %v1905 = vmul.f32 %v1873, 0.3275911
        %v1906 = vmul.f32 %v1874, 0.3275911
        %v1907 = vmul.f32 %v1875, 0.3275911
        %v1908 = vmul.f32 %v1876, 0.3275911
        %v1909 = vmul.f32 %v1877, 0.3275911
        %v1910 = vmul.f32 %v1878, 0.3275911
        %v1911 = vadd.f32 %v1879, 1.0
        %v1912 = vadd.f32 %v1880, 1.0
        %v1913 = vadd.f32 %v1881, 1.0
        %v1914 = vadd.f32 %v1882, 1.0
        %v1915 = vadd.f32 %v1883, 1.0
        %v1916 = vadd.f32 %v1884, 1.0
        %v1917 = vadd.f32 %v1885, 1.0
        %v1918 = vadd.f32 %v1886, 1.0
        %v1919 = vadd.f32 %v1887, 1.0
        %v1920 = vadd.f32 %v1888, 1.0
        %v1921 = vadd.f32 %v1889, 1.0
        %v1922 = vadd.f32 %v1890, 1.0
        %v1923 = vadd.f32 %v1891, 1.0
        %v1924 = vadd.f32 %v1892, 1.0
        %v1925 = vadd.f32 %v1893, 1.0
        %v1926 = vadd.f32 %v1894, 1.0
        %v1927 = vadd.f32 %v1895, 1.0
        %v1928 = vadd.f32 %v1896, 1.0
        %v1929 = vadd.f32 %v1897, 1.0
        %v1930 = vadd.f32 %v1898, 1.0
        %v1931 = vadd.f32 %v1899, 1.0
        %v1932 = vadd.f32 %v1900, 1.0
        %v1933 = vadd.f32 %v1901, 1.0
        %v1934 = vadd.f32 %v1902, 1.0
        %v1935 = vadd.f32 %v1903, 1.0
        %v1936 = vadd.f32 %v1904, 1.0
        %v1937 = vadd.f32 %v1905, 1.0
        %v1938 = vadd.f32 %v1906, 1.0
        %v1939 = vadd.f32 %v1907, 1.0
        %v1940 = vadd.f32 %v1908, 1.0
        %v1941 = vadd.f32 %v1909, 1.0
        %v1942 = vadd.f32 %v1910, 1.0
        %v1943 = vrcp.pop %v1911
        %v1944 = vmul.f32 1.0, %v1943
        %v1945 = vrcp.pop %v1912
        %v1946 = vmul.f32 1.0, %v1945
        %v1947 = vrcp.pop %v1913
        %v1948 = vmul.f32 1.0, %v1947
        %v1949 = vrcp.pop %v1914
        %v1950 = vmul.f32 1.0, %v1949
        %v1951 = vrcp.pop %v1915
        %v1952 = vmul.f32 1.0, %v1951
        %v1953 = vrcp.pop %v1916
        %v1954 = vmul.f32 1.0, %v1953
        %v1955 = vrcp.pop %v1917
        %v1956 = vmul.f32 1.0, %v1955
        %v1957 = vrcp.pop %v1918
        %v1958 = vmul.f32 1.0, %v1957
        %v1959 = vrcp.pop %v1919
        %v1960 = vmul.f32 1.0, %v1959
        %v1961 = vrcp.pop %v1920
        %v1962 = vmul.f32 1.0, %v1961
        %v1963 = vrcp.pop %v1921
        %v1964 = vmul.f32 1.0, %v1963
        %v1965 = vrcp.pop %v1922
        %v1966 = vmul.f32 1.0, %v1965
        %v1967 = vrcp.pop %v1923
        %v1968 = vmul.f32 1.0, %v1967
        %v1969 = vrcp.pop %v1924
        %v1970 = vmul.f32 1.0, %v1969
        %v1971 = vrcp.pop %v1925
        %v1972 = vmul.f32 1.0, %v1971
        %v1973 = vrcp.pop %v1926
        %v1974 = vmul.f32 1.0, %v1973
        %v1975 = vrcp.pop %v1927
        %v1976 = vmul.f32 1.0, %v1975
        %v1977 = vrcp.pop %v1928
        %v1978 = vmul.f32 1.0, %v1977
        %v1979 = vrcp.pop %v1929
        %v1980 = vmul.f32 1.0, %v1979
        %v1981 = vrcp.pop %v1930
        %v1982 = vmul.f32 1.0, %v1981
        %v1983 = vrcp.pop %v1931
        %v1984 = vmul.f32 1.0, %v1983
        %v1985 = vrcp.pop %v1932
        %v1986 = vmul.f32 1.0, %v1985
        %v1987 = vrcp.pop %v1933
        %v1988 = vmul.f32 1.0, %v1987
        %v1989 = vrcp.pop %v1934
        %v1990 = vmul.f32 1.0, %v1989
        %v1991 = vrcp.pop %v1935
        %v1992 = vmul.f32 1.0, %v1991
        %v1993 = vrcp.pop %v1936
        %v1994 = vmul.f32 1.0, %v1993
        %v1995 = vrcp.pop %v1937
        %v1996 = vmul.f32 1.0, %v1995
        %v1997 = vrcp.pop %v1938
        %v1998 = vmul.f32 1.0, %v1997
        %v1999 = vrcp.pop %v1939
        %v2000 = vmul.f32 1.0, %v1999
        %v2001 = vrcp.pop %v1940
        %v2002 = vmul.f32 1.0, %v2001
        %v2003 = vrcp.pop %v1941
        %v2004 = vmul.f32 1.0, %v2003
        %v2005 = vrcp.pop %v1942
        %v2006 = vmul.f32 1.0, %v2005
        %v2007 = vmul.f32 %v1944, 1.0614054
        %v2008 = vmul.f32 %v1946, 1.0614054
        %v2009 = vmul.f32 %v1948, 1.0614054
        %v2010 = vmul.f32 %v1950, 1.0614054
        %v2011 = vmul.f32 %v1952, 1.0614054
        %v2012 = vmul.f32 %v1954, 1.0614054
        %v2013 = vmul.f32 %v1956, 1.0614054
        %v2014 = vmul.f32 %v1958, 1.0614054
        %v2015 = vmul.f32 %v1960, 1.0614054
        %v2016 = vmul.f32 %v1962, 1.0614054
        %v2017 = vmul.f32 %v1964, 1.0614054
        %v2018 = vmul.f32 %v1966, 1.0614054
        %v2019 = vmul.f32 %v1968, 1.0614054
        %v2020 = vmul.f32 %v1970, 1.0614054
        %v2021 = vmul.f32 %v1972, 1.0614054
        %v2022 = vmul.f32 %v1974, 1.0614054
        %v2023 = vmul.f32 %v1976, 1.0614054
        %v2024 = vmul.f32 %v1978, 1.0614054
        %v2025 = vmul.f32 %v1980, 1.0614054
        %v2026 = vmul.f32 %v1982, 1.0614054
        %v2027 = vmul.f32 %v1984, 1.0614054
        %v2028 = vmul.f32 %v1986, 1.0614054
        %v2029 = vmul.f32 %v1988, 1.0614054
        %v2030 = vmul.f32 %v1990, 1.0614054
        %v2031 = vmul.f32 %v1992, 1.0614054
        %v2032 = vmul.f32 %v1994, 1.0614054
        %v2033 = vmul.f32 %v1996, 1.0614054
        %v2034 = vmul.f32 %v1998, 1.0614054
        %v2035 = vmul.f32 %v2000, 1.0614054
        %v2036 = vmul.f32 %v2002, 1.0614054
        %v2037 = vmul.f32 %v2004, 1.0614054
        %v2038 = vmul.f32 %v2006, 1.0614054
        %v2039 = vadd.f32 %v2007, -1.4531521
        %v2040 = vadd.f32 %v2008, -1.4531521
        %v2041 = vadd.f32 %v2009, -1.4531521
        %v2042 = vadd.f32 %v2010, -1.4531521
        %v2043 = vadd.f32 %v2011, -1.4531521
        %v2044 = vadd.f32 %v2012, -1.4531521
        %v2045 = vadd.f32 %v2013, -1.4531521
        %v2046 = vadd.f32 %v2014, -1.4531521
        %v2047 = vadd.f32 %v2015, -1.4531521
        %v2048 = vadd.f32 %v2016, -1.4531521
        %v2049 = vadd.f32 %v2017, -1.4531521
        %v2050 = vadd.f32 %v2018, -1.4531521
        %v2051 = vadd.f32 %v2019, -1.4531521
        %v2052 = vadd.f32 %v2020, -1.4531521
        %v2053 = vadd.f32 %v2021, -1.4531521
        %v2054 = vadd.f32 %v2022, -1.4531521
        %v2055 = vadd.f32 %v2023, -1.4531521
        %v2056 = vadd.f32 %v2024, -1.4531521
        %v2057 = vadd.f32 %v2025, -1.4531521
        %v2058 = vadd.f32 %v2026, -1.4531521
        %v2059 = vadd.f32 %v2027, -1.4531521
        %v2060 = vadd.f32 %v2028, -1.4531521
        %v2061 = vadd.f32 %v2029, -1.4531521
        %v2062 = vadd.f32 %v2030, -1.4531521
        %v2063 = vadd.f32 %v2031, -1.4531521
        %v2064 = vadd.f32 %v2032, -1.4531521
        %v2065 = vadd.f32 %v2033, -1.4531521
        %v2066 = vadd.f32 %v2034, -1.4531521
        %v2067 = vadd.f32 %v2035, -1.4531521
        %v2068 = vadd.f32 %v2036, -1.4531521
        %v2069 = vadd.f32 %v2037, -1.4531521
        %v2070 = vadd.f32 %v2038, -1.4531521
        %v2071 = vmul.f32 %v2039, %v1944
        %v2072 = vmul.f32 %v2040, %v1946
        %v2073 = vmul.f32 %v2041, %v1948
        %v2074 = vmul.f32 %v2042, %v1950
        %v2075 = vmul.f32 %v2043, %v1952
        %v2076 = vmul.f32 %v2044, %v1954
        %v2077 = vmul.f32 %v2045, %v1956
        %v2078 = vmul.f32 %v2046, %v1958
        %v2079 = vmul.f32 %v2047, %v1960
        %v2080 = vmul.f32 %v2048, %v1962
        %v2081 = vmul.f32 %v2049, %v1964
        %v2082 = vmul.f32 %v2050, %v1966
        %v2083 = vmul.f32 %v2051, %v1968
        %v2084 = vmul.f32 %v2052, %v1970
        %v2085 = vmul.f32 %v2053, %v1972
        %v2086 = vmul.f32 %v2054, %v1974
        %v2087 = vmul.f32 %v2055, %v1976
        %v2088 = vmul.f32 %v2056, %v1978
        %v2089 = vmul.f32 %v2057, %v1980
        %v2090 = vmul.f32 %v2058, %v1982
        %v2091 = vmul.f32 %v2059, %v1984
        %v2092 = vmul.f32 %v2060, %v1986
        %v2093 = vmul.f32 %v2061, %v1988
        %v2094 = vmul.f32 %v2062, %v1990
        %v2095 = vmul.f32 %v2063, %v1992
        %v2096 = vmul.f32 %v2064, %v1994
        %v2097 = vmul.f32 %v2065, %v1996
        %v2098 = vmul.f32 %v2066, %v1998
        %v2099 = vmul.f32 %v2067, %v2000
        %v2100 = vmul.f32 %v2068, %v2002
        %v2101 = vmul.f32 %v2069, %v2004
        %v2102 = vmul.f32 %v2070, %v2006
        %v2103 = vadd.f32 %v2071, 1.4214138
        %v2104 = vadd.f32 %v2072, 1.4214138
        %v2105 = vadd.f32 %v2073, 1.4214138
        %v2106 = vadd.f32 %v2074, 1.4214138
        %v2107 = vadd.f32 %v2075, 1.4214138
        %v2108 = vadd.f32 %v2076, 1.4214138
        %v2109 = vadd.f32 %v2077, 1.4214138
        %v2110 = vadd.f32 %v2078, 1.4214138
        %v2111 = vadd.f32 %v2079, 1.4214138
        %v2112 = vadd.f32 %v2080, 1.4214138
        %v2113 = vadd.f32 %v2081, 1.4214138
        %v2114 = vadd.f32 %v2082, 1.4214138
        %v2115 = vadd.f32 %v2083, 1.4214138
        %v2116 = vadd.f32 %v2084, 1.4214138
        %v2117 = vadd.f32 %v2085, 1.4214138
        %v2118 = vadd.f32 %v2086, 1.4214138
        %v2119 = vadd.f32 %v2087, 1.4214138
        %v2120 = vadd.f32 %v2088, 1.4214138
        %v2121 = vadd.f32 %v2089, 1.4214138
        %v2122 = vadd.f32 %v2090, 1.4214138
        %v2123 = vadd.f32 %v2091, 1.4214138
        %v2124 = vadd.f32 %v2092, 1.4214138
        %v2125 = vadd.f32 %v2093, 1.4214138
        %v2126 = vadd.f32 %v2094, 1.4214138
        %v2127 = vadd.f32 %v2095, 1.4214138
        %v2128 = vadd.f32 %v2096, 1.4214138
        %v2129 = vadd.f32 %v2097, 1.4214138
        %v2130 = vadd.f32 %v2098, 1.4214138
        %v2131 = vadd.f32 %v2099, 1.4214138
        %v2132 = vadd.f32 %v2100, 1.4214138
        %v2133 = vadd.f32 %v2101, 1.4214138
        %v2134 = vadd.f32 %v2102, 1.4214138
        %v2135 = vmul.f32 %v2103, %v1944
        %v2136 = vmul.f32 %v2104, %v1946
        %v2137 = vmul.f32 %v2105, %v1948
        %v2138 = vmul.f32 %v2106, %v1950
        %v2139 = vmul.f32 %v2107, %v1952
        %v2140 = vmul.f32 %v2108, %v1954
        %v2141 = vmul.f32 %v2109, %v1956
        %v2142 = vmul.f32 %v2110, %v1958
        %v2143 = vmul.f32 %v2111, %v1960
        %v2144 = vmul.f32 %v2112, %v1962
        %v2145 = vmul.f32 %v2113, %v1964
        %v2146 = vmul.f32 %v2114, %v1966
        %v2147 = vmul.f32 %v2115, %v1968
        %v2148 = vmul.f32 %v2116, %v1970
        %v2149 = vmul.f32 %v2117, %v1972
        %v2150 = vmul.f32 %v2118, %v1974
        %v2151 = vmul.f32 %v2119, %v1976
        %v2152 = vmul.f32 %v2120, %v1978
        %v2153 = vmul.f32 %v2121, %v1980
        %v2154 = vmul.f32 %v2122, %v1982
        %v2155 = vmul.f32 %v2123, %v1984
        %v2156 = vmul.f32 %v2124, %v1986
        %v2157 = vmul.f32 %v2125, %v1988
        %v2158 = vmul.f32 %v2126, %v1990
        %v2159 = vmul.f32 %v2127, %v1992
        %v2160 = vmul.f32 %v2128, %v1994
        %v2161 = vmul.f32 %v2129, %v1996
        %v2162 = vmul.f32 %v2130, %v1998
        %v2163 = vmul.f32 %v2131, %v2000
        %v2164 = vmul.f32 %v2132, %v2002
        %v2165 = vmul.f32 %v2133, %v2004
        %v2166 = vmul.f32 %v2134, %v2006
        %v2167 = vadd.f32 %v2135, -0.28449672
        %v2168 = vadd.f32 %v2136, -0.28449672
        %v2169 = vadd.f32 %v2137, -0.28449672
        %v2170 = vadd.f32 %v2138, -0.28449672
        %v2171 = vadd.f32 %v2139, -0.28449672
        %v2172 = vadd.f32 %v2140, -0.28449672
        %v2173 = vadd.f32 %v2141, -0.28449672
        %v2174 = vadd.f32 %v2142, -0.28449672
        %v2175 = vadd.f32 %v2143, -0.28449672
        %v2176 = vadd.f32 %v2144, -0.28449672
        %v2177 = vadd.f32 %v2145, -0.28449672
        %v2178 = vadd.f32 %v2146, -0.28449672
        %v2179 = vadd.f32 %v2147, -0.28449672
        %v2180 = vadd.f32 %v2148, -0.28449672
        %v2181 = vadd.f32 %v2149, -0.28449672
        %v2182 = vadd.f32 %v2150, -0.28449672
        %v2183 = vadd.f32 %v2151, -0.28449672
        %v2184 = vadd.f32 %v2152, -0.28449672
        %v2185 = vadd.f32 %v2153, -0.28449672
        %v2186 = vadd.f32 %v2154, -0.28449672
        %v2187 = vadd.f32 %v2155, -0.28449672
        %v2188 = vadd.f32 %v2156, -0.28449672
        %v2189 = vadd.f32 %v2157, -0.28449672
        %v2190 = vadd.f32 %v2158, -0.28449672
        %v2191 = vadd.f32 %v2159, -0.28449672
        %v2192 = vadd.f32 %v2160, -0.28449672
        %v2193 = vadd.f32 %v2161, -0.28449672
        %v2194 = vadd.f32 %v2162, -0.28449672
        %v2195 = vadd.f32 %v2163, -0.28449672
        %v2196 = vadd.f32 %v2164, -0.28449672
        %v2197 = vadd.f32 %v2165, -0.28449672
        %v2198 = vadd.f32 %v2166, -0.28449672
        %v2199 = vmul.f32 %v2167, %v1944
        %v2200 = vmul.f32 %v2168, %v1946
        %v2201 = vmul.f32 %v2169, %v1948
        %v2202 = vmul.f32 %v2170, %v1950
        %v2203 = vmul.f32 %v2171, %v1952
        %v2204 = vmul.f32 %v2172, %v1954
        %v2205 = vmul.f32 %v2173, %v1956
        %v2206 = vmul.f32 %v2174, %v1958
        %v2207 = vmul.f32 %v2175, %v1960
        %v2208 = vmul.f32 %v2176, %v1962
        %v2209 = vmul.f32 %v2177, %v1964
        %v2210 = vmul.f32 %v2178, %v1966
        %v2211 = vmul.f32 %v2179, %v1968
        %v2212 = vmul.f32 %v2180, %v1970
        %v2213 = vmul.f32 %v2181, %v1972
        %v2214 = vmul.f32 %v2182, %v1974
        %v2215 = vmul.f32 %v2183, %v1976
        %v2216 = vmul.f32 %v2184, %v1978
        %v2217 = vmul.f32 %v2185, %v1980
        %v2218 = vmul.f32 %v2186, %v1982
        %v2219 = vmul.f32 %v2187, %v1984
        %v2220 = vmul.f32 %v2188, %v1986
        %v2221 = vmul.f32 %v2189, %v1988
        %v2222 = vmul.f32 %v2190, %v1990
        %v2223 = vmul.f32 %v2191, %v1992
        %v2224 = vmul.f32 %v2192, %v1994
        %v2225 = vmul.f32 %v2193, %v1996
        %v2226 = vmul.f32 %v2194, %v1998
        %v2227 = vmul.f32 %v2195, %v2000
        %v2228 = vmul.f32 %v2196, %v2002
        %v2229 = vmul.f32 %v2197, %v2004
        %v2230 = vmul.f32 %v2198, %v2006
        %v2231 = vadd.f32 %v2199, 0.2548296
        %v2232 = vadd.f32 %v2200, 0.2548296
        %v2233 = vadd.f32 %v2201, 0.2548296
        %v2234 = vadd.f32 %v2202, 0.2548296
        %v2235 = vadd.f32 %v2203, 0.2548296
        %v2236 = vadd.f32 %v2204, 0.2548296
        %v2237 = vadd.f32 %v2205, 0.2548296
        %v2238 = vadd.f32 %v2206, 0.2548296
        %v2239 = vadd.f32 %v2207, 0.2548296
        %v2240 = vadd.f32 %v2208, 0.2548296
        %v2241 = vadd.f32 %v2209, 0.2548296
        %v2242 = vadd.f32 %v2210, 0.2548296
        %v2243 = vadd.f32 %v2211, 0.2548296
        %v2244 = vadd.f32 %v2212, 0.2548296
        %v2245 = vadd.f32 %v2213, 0.2548296
        %v2246 = vadd.f32 %v2214, 0.2548296
        %v2247 = vadd.f32 %v2215, 0.2548296
        %v2248 = vadd.f32 %v2216, 0.2548296
        %v2249 = vadd.f32 %v2217, 0.2548296
        %v2250 = vadd.f32 %v2218, 0.2548296
        %v2251 = vadd.f32 %v2219, 0.2548296
        %v2252 = vadd.f32 %v2220, 0.2548296
        %v2253 = vadd.f32 %v2221, 0.2548296
        %v2254 = vadd.f32 %v2222, 0.2548296
        %v2255 = vadd.f32 %v2223, 0.2548296
        %v2256 = vadd.f32 %v2224, 0.2548296
        %v2257 = vadd.f32 %v2225, 0.2548296
        %v2258 = vadd.f32 %v2226, 0.2548296
        %v2259 = vadd.f32 %v2227, 0.2548296
        %v2260 = vadd.f32 %v2228, 0.2548296
        %v2261 = vadd.f32 %v2229, 0.2548296
        %v2262 = vadd.f32 %v2230, 0.2548296
        %v2263 = vmul.f32 %v2231, %v1944
        %v2264 = vmul.f32 %v2232, %v1946
        %v2265 = vmul.f32 %v2233, %v1948
        %v2266 = vmul.f32 %v2234, %v1950
        %v2267 = vmul.f32 %v2235, %v1952
        %v2268 = vmul.f32 %v2236, %v1954
        %v2269 = vmul.f32 %v2237, %v1956
        %v2270 = vmul.f32 %v2238, %v1958
        %v2271 = vmul.f32 %v2239, %v1960
        %v2272 = vmul.f32 %v2240, %v1962
        %v2273 = vmul.f32 %v2241, %v1964
        %v2274 = vmul.f32 %v2242, %v1966
        %v2275 = vmul.f32 %v2243, %v1968
        %v2276 = vmul.f32 %v2244, %v1970
        %v2277 = vmul.f32 %v2245, %v1972
        %v2278 = vmul.f32 %v2246, %v1974
        %v2279 = vmul.f32 %v2247, %v1976
        %v2280 = vmul.f32 %v2248, %v1978
        %v2281 = vmul.f32 %v2249, %v1980
        %v2282 = vmul.f32 %v2250, %v1982
        %v2283 = vmul.f32 %v2251, %v1984
        %v2284 = vmul.f32 %v2252, %v1986
        %v2285 = vmul.f32 %v2253, %v1988
        %v2286 = vmul.f32 %v2254, %v1990
        %v2287 = vmul.f32 %v2255, %v1992
        %v2288 = vmul.f32 %v2256, %v1994
        %v2289 = vmul.f32 %v2257, %v1996
        %v2290 = vmul.f32 %v2258, %v1998
        %v2291 = vmul.f32 %v2259, %v2000
        %v2292 = vmul.f32 %v2260, %v2002
        %v2293 = vmul.f32 %v2261, %v2004
        %v2294 = vmul.f32 %v2262, %v2006
        %v2295 = vmul.f32 %v1847, %v1847
        %v2296 = vmul.f32 %v1848, %v1848
        %v2297 = vmul.f32 %v1849, %v1849
        %v2298 = vmul.f32 %v1850, %v1850
        %v2299 = vmul.f32 %v1851, %v1851
        %v2300 = vmul.f32 %v1852, %v1852
        %v2301 = vmul.f32 %v1853, %v1853
        %v2302 = vmul.f32 %v1854, %v1854
        %v2303 = vmul.f32 %v1855, %v1855
        %v2304 = vmul.f32 %v1856, %v1856
        %v2305 = vmul.f32 %v1857, %v1857
        %v2306 = vmul.f32 %v1858, %v1858
        %v2307 = vmul.f32 %v1859, %v1859
        %v2308 = vmul.f32 %v1860, %v1860
        %v2309 = vmul.f32 %v1861, %v1861
        %v2310 = vmul.f32 %v1862, %v1862
        %v2311 = vmul.f32 %v1863, %v1863
        %v2312 = vmul.f32 %v1864, %v1864
        %v2313 = vmul.f32 %v1865, %v1865
        %v2314 = vmul.f32 %v1866, %v1866
        %v2315 = vmul.f32 %v1867, %v1867
        %v2316 = vmul.f32 %v1868, %v1868
        %v2317 = vmul.f32 %v1869, %v1869
        %v2318 = vmul.f32 %v1870, %v1870
        %v2319 = vmul.f32 %v1871, %v1871
        %v2320 = vmul.f32 %v1872, %v1872
        %v2321 = vmul.f32 %v1873, %v1873
        %v2322 = vmul.f32 %v1874, %v1874
        %v2323 = vmul.f32 %v1875, %v1875
        %v2324 = vmul.f32 %v1876, %v1876
        %v2325 = vmul.f32 %v1877, %v1877
        %v2326 = vmul.f32 %v1878, %v1878
        %v2327 = vsub.f32 0.0, %v2295
        %v2328 = vsub.f32 0.0, %v2296
        %v2329 = vsub.f32 0.0, %v2297
        %v2330 = vsub.f32 0.0, %v2298
        %v2331 = vsub.f32 0.0, %v2299
        %v2332 = vsub.f32 0.0, %v2300
        %v2333 = vsub.f32 0.0, %v2301
        %v2334 = vsub.f32 0.0, %v2302
        %v2335 = vsub.f32 0.0, %v2303
        %v2336 = vsub.f32 0.0, %v2304
        %v2337 = vsub.f32 0.0, %v2305
        %v2338 = vsub.f32 0.0, %v2306
        %v2339 = vsub.f32 0.0, %v2307
        %v2340 = vsub.f32 0.0, %v2308
        %v2341 = vsub.f32 0.0, %v2309
        %v2342 = vsub.f32 0.0, %v2310
        %v2343 = vsub.f32 0.0, %v2311
        %v2344 = vsub.f32 0.0, %v2312
        %v2345 = vsub.f32 0.0, %v2313
        %v2346 = vsub.f32 0.0, %v2314
        %v2347 = vsub.f32 0.0, %v2315
        %v2348 = vsub.f32 0.0, %v2316
        %v2349 = vsub.f32 0.0, %v2317
        %v2350 = vsub.f32 0.0, %v2318
        %v2351 = vsub.f32 0.0, %v2319
        %v2352 = vsub.f32 0.0, %v2320
        %v2353 = vsub.f32 0.0, %v2321
        %v2354 = vsub.f32 0.0, %v2322
        %v2355 = vsub.f32 0.0, %v2323
        %v2356 = vsub.f32 0.0, %v2324
        %v2357 = vsub.f32 0.0, %v2325
        %v2358 = vsub.f32 0.0, %v2326
        %v2359 = vmul.f32 %v2327, 1.442695
        %v2360 = vpow.pop %v2359
        %v2361 = vmul.f32 %v2328, 1.442695
        %v2362 = vpow.pop %v2361
        %v2363 = vmul.f32 %v2329, 1.442695
        %v2364 = vpow.pop %v2363
        %v2365 = vmul.f32 %v2330, 1.442695
        %v2366 = vpow.pop %v2365
        %v2367 = vmul.f32 %v2331, 1.442695
        %v2368 = vpow.pop %v2367
        %v2369 = vmul.f32 %v2332, 1.442695
        %v2370 = vpow.pop %v2369
        %v2371 = vmul.f32 %v2333, 1.442695
        %v2372 = vpow.pop %v2371
        %v2373 = vmul.f32 %v2334, 1.442695
        %v2374 = vpow.pop %v2373
        %v2375 = vmul.f32 %v2335, 1.442695
        %v2376 = vpow.pop %v2375
        %v2377 = vmul.f32 %v2336, 1.442695
        %v2378 = vpow.pop %v2377
        %v2379 = vmul.f32 %v2337, 1.442695
        %v2380 = vpow.pop %v2379
        %v2381 = vmul.f32 %v2338, 1.442695
        %v2382 = vpow.pop %v2381
        %v2383 = vmul.f32 %v2339, 1.442695
        %v2384 = vpow.pop %v2383
        %v2385 = vmul.f32 %v2340, 1.442695
        %v2386 = vpow.pop %v2385
        %v2387 = vmul.f32 %v2341, 1.442695
        %v2388 = vpow.pop %v2387
        %v2389 = vmul.f32 %v2342, 1.442695
        %v2390 = vpow.pop %v2389
        %v2391 = vmul.f32 %v2343, 1.442695
        %v2392 = vpow.pop %v2391
        %v2393 = vmul.f32 %v2344, 1.442695
        %v2394 = vpow.pop %v2393
        %v2395 = vmul.f32 %v2345, 1.442695
        %v2396 = vpow.pop %v2395
        %v2397 = vmul.f32 %v2346, 1.442695
        %v2398 = vpow.pop %v2397
        %v2399 = vmul.f32 %v2347, 1.442695
        %v2400 = vpow.pop %v2399
        %v2401 = vmul.f32 %v2348, 1.442695
        %v2402 = vpow.pop %v2401
        %v2403 = vmul.f32 %v2349, 1.442695
        %v2404 = vpow.pop %v2403
        %v2405 = vmul.f32 %v2350, 1.442695
        %v2406 = vpow.pop %v2405
        %v2407 = vmul.f32 %v2351, 1.442695
        %v2408 = vpow.pop %v2407
        %v2409 = vmul.f32 %v2352, 1.442695
        %v2410 = vpow.pop %v2409
        %v2411 = vmul.f32 %v2353, 1.442695
        %v2412 = vpow.pop %v2411
        %v2413 = vmul.f32 %v2354, 1.442695
        %v2414 = vpow.pop %v2413
        %v2415 = vmul.f32 %v2355, 1.442695
        %v2416 = vpow.pop %v2415
        %v2417 = vmul.f32 %v2356, 1.442695
        %v2418 = vpow.pop %v2417
        %v2419 = vmul.f32 %v2357, 1.442695
        %v2420 = vpow.pop %v2419
        %v2421 = vmul.f32 %v2358, 1.442695
        %v2422 = vpow.pop %v2421
        %v2423 = vmul.f32 %v2263, %v2360
        %v2424 = vmul.f32 %v2264, %v2362
        %v2425 = vmul.f32 %v2265, %v2364
        %v2426 = vmul.f32 %v2266, %v2366
        %v2427 = vmul.f32 %v2267, %v2368
        %v2428 = vmul.f32 %v2268, %v2370
        %v2429 = vmul.f32 %v2269, %v2372
        %v2430 = vmul.f32 %v2270, %v2374
        %v2431 = vmul.f32 %v2271, %v2376
        %v2432 = vmul.f32 %v2272, %v2378
        %v2433 = vmul.f32 %v2273, %v2380
        %v2434 = vmul.f32 %v2274, %v2382
        %v2435 = vmul.f32 %v2275, %v2384
        %v2436 = vmul.f32 %v2276, %v2386
        %v2437 = vmul.f32 %v2277, %v2388
        %v2438 = vmul.f32 %v2278, %v2390
        %v2439 = vmul.f32 %v2279, %v2392
        %v2440 = vmul.f32 %v2280, %v2394
        %v2441 = vmul.f32 %v2281, %v2396
        %v2442 = vmul.f32 %v2282, %v2398
        %v2443 = vmul.f32 %v2283, %v2400
        %v2444 = vmul.f32 %v2284, %v2402
        %v2445 = vmul.f32 %v2285, %v2404
        %v2446 = vmul.f32 %v2286, %v2406
        %v2447 = vmul.f32 %v2287, %v2408
        %v2448 = vmul.f32 %v2288, %v2410
        %v2449 = vmul.f32 %v2289, %v2412
        %v2450 = vmul.f32 %v2290, %v2414
        %v2451 = vmul.f32 %v2291, %v2416
        %v2452 = vmul.f32 %v2292, %v2418
        %v2453 = vmul.f32 %v2293, %v2420
        %v2454 = vmul.f32 %v2294, %v2422
        %v2455 = vsub.f32 1.0, %v2423
        %v2456 = vsub.f32 1.0, %v2424
        %v2457 = vsub.f32 1.0, %v2425
        %v2458 = vsub.f32 1.0, %v2426
        %v2459 = vsub.f32 1.0, %v2427
        %v2460 = vsub.f32 1.0, %v2428
        %v2461 = vsub.f32 1.0, %v2429
        %v2462 = vsub.f32 1.0, %v2430
        %v2463 = vsub.f32 1.0, %v2431
        %v2464 = vsub.f32 1.0, %v2432
        %v2465 = vsub.f32 1.0, %v2433
        %v2466 = vsub.f32 1.0, %v2434
        %v2467 = vsub.f32 1.0, %v2435
        %v2468 = vsub.f32 1.0, %v2436
        %v2469 = vsub.f32 1.0, %v2437
        %v2470 = vsub.f32 1.0, %v2438
        %v2471 = vsub.f32 1.0, %v2439
        %v2472 = vsub.f32 1.0, %v2440
        %v2473 = vsub.f32 1.0, %v2441
        %v2474 = vsub.f32 1.0, %v2442
        %v2475 = vsub.f32 1.0, %v2443
        %v2476 = vsub.f32 1.0, %v2444
        %v2477 = vsub.f32 1.0, %v2445
        %v2478 = vsub.f32 1.0, %v2446
        %v2479 = vsub.f32 1.0, %v2447
        %v2480 = vsub.f32 1.0, %v2448
        %v2481 = vsub.f32 1.0, %v2449
        %v2482 = vsub.f32 1.0, %v2450
        %v2483 = vsub.f32 1.0, %v2451
        %v2484 = vsub.f32 1.0, %v2452
        %v2485 = vsub.f32 1.0, %v2453
        %v2486 = vsub.f32 1.0, %v2454
        %vm2487 = vcmp.lt.f32.partialorder %v1815, 0.0
        %vm2488 = vcmp.lt.f32.partialorder %v1816, 0.0
        %vm2489 = vcmp.lt.f32.partialorder %v1817, 0.0
        %vm2490 = vcmp.lt.f32.partialorder %v1818, 0.0
        %vm2491 = vcmp.lt.f32.partialorder %v1819, 0.0
        %vm2492 = vcmp.lt.f32.partialorder %v1820, 0.0
        %vm2493 = vcmp.lt.f32.partialorder %v1821, 0.0
        %vm2494 = vcmp.lt.f32.partialorder %v1822, 0.0
        %vm2495 = vcmp.lt.f32.partialorder %v1823, 0.0
        %vm2496 = vcmp.lt.f32.partialorder %v1824, 0.0
        %vm2497 = vcmp.lt.f32.partialorder %v1825, 0.0
        %vm2498 = vcmp.lt.f32.partialorder %v1826, 0.0
        %vm2499 = vcmp.lt.f32.partialorder %v1827, 0.0
        %vm2500 = vcmp.lt.f32.partialorder %v1828, 0.0
        %vm2501 = vcmp.lt.f32.partialorder %v1829, 0.0
        %vm2502 = vcmp.lt.f32.partialorder %v1830, 0.0
        %vm2503 = vcmp.lt.f32.partialorder %v1831, 0.0
        %vm2504 = vcmp.lt.f32.partialorder %v1832, 0.0
        %vm2505 = vcmp.lt.f32.partialorder %v1833, 0.0
        %vm2506 = vcmp.lt.f32.partialorder %v1834, 0.0
        %vm2507 = vcmp.lt.f32.partialorder %v1835, 0.0
        %vm2508 = vcmp.lt.f32.partialorder %v1836, 0.0
        %vm2509 = vcmp.lt.f32.partialorder %v1837, 0.0
        %vm2510 = vcmp.lt.f32.partialorder %v1838, 0.0
        %vm2511 = vcmp.lt.f32.partialorder %v1839, 0.0
        %vm2512 = vcmp.lt.f32.partialorder %v1840, 0.0
        %vm2513 = vcmp.lt.f32.partialorder %v1841, 0.0
        %vm2514 = vcmp.lt.f32.partialorder %v1842, 0.0
        %vm2515 = vcmp.lt.f32.partialorder %v1843, 0.0
        %vm2516 = vcmp.lt.f32.partialorder %v1844, 0.0
        %vm2517 = vcmp.lt.f32.partialorder %v1845, 0.0
        %vm2518 = vcmp.lt.f32.partialorder %v1846, 0.0
        %v2519 = vsub.f32 0.0, %v2455
        %v2520 = vsub.f32 0.0, %v2456
        %v2521 = vsub.f32 0.0, %v2457
        %v2522 = vsub.f32 0.0, %v2458
        %v2523 = vsub.f32 0.0, %v2459
        %v2524 = vsub.f32 0.0, %v2460
        %v2525 = vsub.f32 0.0, %v2461
        %v2526 = vsub.f32 0.0, %v2462
        %v2527 = vsub.f32 0.0, %v2463
        %v2528 = vsub.f32 0.0, %v2464
        %v2529 = vsub.f32 0.0, %v2465
        %v2530 = vsub.f32 0.0, %v2466
        %v2531 = vsub.f32 0.0, %v2467
        %v2532 = vsub.f32 0.0, %v2468
        %v2533 = vsub.f32 0.0, %v2469
        %v2534 = vsub.f32 0.0, %v2470
        %v2535 = vsub.f32 0.0, %v2471
        %v2536 = vsub.f32 0.0, %v2472
        %v2537 = vsub.f32 0.0, %v2473
        %v2538 = vsub.f32 0.0, %v2474
        %v2539 = vsub.f32 0.0, %v2475
        %v2540 = vsub.f32 0.0, %v2476
        %v2541 = vsub.f32 0.0, %v2477
        %v2542 = vsub.f32 0.0, %v2478
        %v2543 = vsub.f32 0.0, %v2479
        %v2544 = vsub.f32 0.0, %v2480
        %v2545 = vsub.f32 0.0, %v2481
        %v2546 = vsub.f32 0.0, %v2482
        %v2547 = vsub.f32 0.0, %v2483
        %v2548 = vsub.f32 0.0, %v2484
        %v2549 = vsub.f32 0.0, %v2485
        %v2550 = vsub.f32 0.0, %v2486
        %v2551 = vsel %vm2487, %v2519, %v2455
        %v2552 = vsel %vm2488, %v2520, %v2456
        %v2553 = vsel %vm2489, %v2521, %v2457
        %v2554 = vsel %vm2490, %v2522, %v2458
        %v2555 = vsel %vm2491, %v2523, %v2459
        %v2556 = vsel %vm2492, %v2524, %v2460
        %v2557 = vsel %vm2493, %v2525, %v2461
        %v2558 = vsel %vm2494, %v2526, %v2462
        %v2559 = vsel %vm2495, %v2527, %v2463
        %v2560 = vsel %vm2496, %v2528, %v2464
        %v2561 = vsel %vm2497, %v2529, %v2465
        %v2562 = vsel %vm2498, %v2530, %v2466
        %v2563 = vsel %vm2499, %v2531, %v2467
        %v2564 = vsel %vm2500, %v2532, %v2468
        %v2565 = vsel %vm2501, %v2533, %v2469
        %v2566 = vsel %vm2502, %v2534, %v2470
        %v2567 = vsel %vm2503, %v2535, %v2471
        %v2568 = vsel %vm2504, %v2536, %v2472
        %v2569 = vsel %vm2505, %v2537, %v2473
        %v2570 = vsel %vm2506, %v2538, %v2474
        %v2571 = vsel %vm2507, %v2539, %v2475
        %v2572 = vsel %vm2508, %v2540, %v2476
        %v2573 = vsel %vm2509, %v2541, %v2477
        %v2574 = vsel %vm2510, %v2542, %v2478
        %v2575 = vsel %vm2511, %v2543, %v2479
        %v2576 = vsel %vm2512, %v2544, %v2480
        %v2577 = vsel %vm2513, %v2545, %v2481
        %v2578 = vsel %vm2514, %v2546, %v2482
        %v2579 = vsel %vm2515, %v2547, %v2483
        %v2580 = vsel %vm2516, %v2548, %v2484
        %v2581 = vsel %vm2517, %v2549, %v2485
        %v2582 = vsel %vm2518, %v2550, %v2486
        %v2583 = vadd.f32 %v2551, 1.0
        %v2584 = vadd.f32 %v2552, 1.0
        %v2585 = vadd.f32 %v2553, 1.0
        %v2586 = vadd.f32 %v2554, 1.0
        %v2587 = vadd.f32 %v2555, 1.0
        %v2588 = vadd.f32 %v2556, 1.0
        %v2589 = vadd.f32 %v2557, 1.0
        %v2590 = vadd.f32 %v2558, 1.0
        %v2591 = vadd.f32 %v2559, 1.0
        %v2592 = vadd.f32 %v2560, 1.0
        %v2593 = vadd.f32 %v2561, 1.0
        %v2594 = vadd.f32 %v2562, 1.0
        %v2595 = vadd.f32 %v2563, 1.0
        %v2596 = vadd.f32 %v2564, 1.0
        %v2597 = vadd.f32 %v2565, 1.0
        %v2598 = vadd.f32 %v2566, 1.0
        %v2599 = vadd.f32 %v2567, 1.0
        %v2600 = vadd.f32 %v2568, 1.0
        %v2601 = vadd.f32 %v2569, 1.0
        %v2602 = vadd.f32 %v2570, 1.0
        %v2603 = vadd.f32 %v2571, 1.0
        %v2604 = vadd.f32 %v2572, 1.0
        %v2605 = vadd.f32 %v2573, 1.0
        %v2606 = vadd.f32 %v2574, 1.0
        %v2607 = vadd.f32 %v2575, 1.0
        %v2608 = vadd.f32 %v2576, 1.0
        %v2609 = vadd.f32 %v2577, 1.0
        %v2610 = vadd.f32 %v2578, 1.0
        %v2611 = vadd.f32 %v2579, 1.0
        %v2612 = vadd.f32 %v2580, 1.0
        %v2613 = vadd.f32 %v2581, 1.0
        %v2614 = vadd.f32 %v2582, 1.0
        %v2615 = vmul.f32 %v1783, %v2583
        %v2616 = vmul.f32 %v1784, %v2584
        %v2617 = vmul.f32 %v1785, %v2585
        %v2618 = vmul.f32 %v1786, %v2586
        %v2619 = vmul.f32 %v1787, %v2587
        %v2620 = vmul.f32 %v1788, %v2588
        %v2621 = vmul.f32 %v1789, %v2589
        %v2622 = vmul.f32 %v1790, %v2590
        %v2623 = vmul.f32 %v1791, %v2591
        %v2624 = vmul.f32 %v1792, %v2592
        %v2625 = vmul.f32 %v1793, %v2593
        %v2626 = vmul.f32 %v1794, %v2594
        %v2627 = vmul.f32 %v1795, %v2595
        %v2628 = vmul.f32 %v1796, %v2596
        %v2629 = vmul.f32 %v1797, %v2597
        %v2630 = vmul.f32 %v1798, %v2598
        %v2631 = vmul.f32 %v1799, %v2599
        %v2632 = vmul.f32 %v1800, %v2600
        %v2633 = vmul.f32 %v1801, %v2601
        %v2634 = vmul.f32 %v1802, %v2602
        %v2635 = vmul.f32 %v1803, %v2603
        %v2636 = vmul.f32 %v1804, %v2604
        %v2637 = vmul.f32 %v1805, %v2605
        %v2638 = vmul.f32 %v1806, %v2606
        %v2639 = vmul.f32 %v1807, %v2607
        %v2640 = vmul.f32 %v1808, %v2608
        %v2641 = vmul.f32 %v1809, %v2609
        %v2642 = vmul.f32 %v1810, %v2610
        %v2643 = vmul.f32 %v1811, %v2611
        %v2644 = vmul.f32 %v1812, %v2612
        %v2645 = vmul.f32 %v1813, %v2613
        %v2646 = vmul.f32 %v1814, %v2614
        %v2647 = vld [vmem:[%s5] sm:$0xff]
        %v2648 = vld [vmem:[%s5 + $0x8] sm:$0xff]
        %v2649 = vld [vmem:[%s5 + $0x10] sm:$0xff]
        %v2650 = vld [vmem:[%s5 + $0x18] sm:$0xff]
        %v2651 = vld [vmem:[%s5 + $0x20] sm:$0xff]
        %v2652 = vld [vmem:[%s5 + $0x28] sm:$0xff]
        %v2653 = vld [vmem:[%s5 + $0x30] sm:$0xff]
        %v2654 = vld [vmem:[%s5 + $0x38] sm:$0xff]
        %2656 = vset.pattern.permute.xlu0 0
        %2657 = vperm.xlu0 %2656, %v2647
        %v2658 = vpop.permute.xlu0 %2657
        %2661 = vset.pattern.permute.xlu0 0
        %2662 = vperm.xlu0 %2661, %v2648
        %v2663 = vpop.permute.xlu0 %2662
        %2666 = vset.pattern.permute.xlu0 0
        %2667 = vperm.xlu0 %2666, %v2649
        %v2668 = vpop.permute.xlu0 %2667
        %2671 = vset.pattern.permute.xlu0 0
        %2672 = vperm.xlu0 %2671, %v2650
        %v2673 = vpop.permute.xlu0 %2672
        %2676 = vset.pattern.permute.xlu0 0
        %2677 = vperm.xlu0 %2676, %v2651
        %v2678 = vpop.permute.xlu0 %2677
        %2681 = vset.pattern.permute.xlu0 0
        %2682 = vperm.xlu0 %2681, %v2652
        %v2683 = vpop.permute.xlu0 %2682
        %2686 = vset.pattern.permute.xlu0 0
        %2687 = vperm.xlu0 %2686, %v2653
        %v2688 = vpop.permute.xlu0 %2687
        %2691 = vset.pattern.permute.xlu0 0
        %2692 = vperm.xlu0 %2691, %v2654
        %v2693 = vpop.permute.xlu0 %2692
        %v2695 = vmul.f32 %v2658, %v2615
        %v2696 = vmul.f32 %v2658, %v2616
        %v2697 = vmul.f32 %v2658, %v2617
        %v2698 = vmul.f32 %v2658, %v2618
        %v2699 = vmul.f32 %v2663, %v2619
        %v2700 = vmul.f32 %v2663, %v2620
        %v2701 = vmul.f32 %v2663, %v2621
        %v2702 = vmul.f32 %v2663, %v2622
        %v2703 = vmul.f32 %v2668, %v2623
        %v2704 = vmul.f32 %v2668, %v2624
        %v2705 = vmul.f32 %v2668, %v2625
        %v2706 = vmul.f32 %v2668, %v2626
        %v2707 = vmul.f32 %v2673, %v2627
        %v2708 = vmul.f32 %v2673, %v2628
        %v2709 = vmul.f32 %v2673, %v2629
        %v2710 = vmul.f32 %v2673, %v2630
        %v2711 = vmul.f32 %v2678, %v2631
        %v2712 = vmul.f32 %v2678, %v2632
        %v2713 = vmul.f32 %v2678, %v2633
        %v2714 = vmul.f32 %v2678, %v2634
        %v2715 = vmul.f32 %v2683, %v2635
        %v2716 = vmul.f32 %v2683, %v2636
        %v2717 = vmul.f32 %v2683, %v2637
        %v2718 = vmul.f32 %v2683, %v2638
        %v2719 = vmul.f32 %v2688, %v2639
        %v2720 = vmul.f32 %v2688, %v2640
        %v2721 = vmul.f32 %v2688, %v2641
        %v2722 = vmul.f32 %v2688, %v2642
        %v2723 = vmul.f32 %v2693, %v2643
        %v2724 = vmul.f32 %v2693, %v2644
        %v2725 = vmul.f32 %v2693, %v2645
        %v2726 = vmul.f32 %v2693, %v2646
        %v2727 = vadd.f32 %v2695, %v2699
        %v2728 = vadd.f32 %v2727, %v2703
        %v2729 = vadd.f32 %v2728, %v2707
        %v2730 = vadd.f32 %v2729, %v2711
        %v2731 = vadd.f32 %v2730, %v2715
        %v2732 = vadd.f32 %v2731, %v2719
        %v2733 = vadd.f32 %v2732, %v2723
        %v2734 = vrot.slane %v2733, 4
        %v2735 = vadd.f32 %v2733, %v2734
        %v2736 = vrot.slane %v2735, 2
        %v2737 = vadd.f32 %v2735, %v2736
        %v2738 = vrot.slane %v2737, 1
        %v2739 = vadd.f32 %v2737, %v2738
        %v2740 = vadd.f32 %v2696, %v2700
        %v2741 = vadd.f32 %v2740, %v2704
        %v2742 = vadd.f32 %v2741, %v2708
        %v2743 = vadd.f32 %v2742, %v2712
        %v2744 = vadd.f32 %v2743, %v2716
        %v2745 = vadd.f32 %v2744, %v2720
        %v2746 = vadd.f32 %v2745, %v2724
        %v2747 = vrot.slane %v2746, 4
        %v2748 = vadd.f32 %v2746, %v2747
        %v2749 = vrot.slane %v2748, 2
        %v2750 = vadd.f32 %v2748, %v2749
        %v2751 = vrot.slane %v2750, 1
        %v2752 = vadd.f32 %v2750, %v2751
        %v2753 = vadd.f32 %v2697, %v2701
        %v2754 = vadd.f32 %v2753, %v2705
        %v2755 = vadd.f32 %v2754, %v2709
        %v2756 = vadd.f32 %v2755, %v2713
        %v2757 = vadd.f32 %v2756, %v2717
        %v2758 = vadd.f32 %v2757, %v2721
        %v2759 = vadd.f32 %v2758, %v2725
        %v2760 = vrot.slane %v2759, 4
        %v2761 = vadd.f32 %v2759, %v2760
        %v2762 = vrot.slane %v2761, 2
        %v2763 = vadd.f32 %v2761, %v2762
        %v2764 = vrot.slane %v2763, 1
        %v2765 = vadd.f32 %v2763, %v2764
        %v2766 = vadd.f32 %v2698, %v2702
        %v2767 = vadd.f32 %v2766, %v2706
        %v2768 = vadd.f32 %v2767, %v2710
        %v2769 = vadd.f32 %v2768, %v2714
        %v2770 = vadd.f32 %v2769, %v2718
        %v2771 = vadd.f32 %v2770, %v2722
        %v2772 = vadd.f32 %v2771, %v2726
        %v2773 = vrot.slane %v2772, 4
        %v2774 = vadd.f32 %v2772, %v2773
        %v2775 = vrot.slane %v2774, 2
        %v2776 = vadd.f32 %v2774, %v2775
        %v2777 = vrot.slane %v2776, 1
        %v2778 = vadd.f32 %v2776, %v2777
        %v2779 = vld [vmem:[#allocation2] sm:$0x1]
        %2781 = vset.pattern.permute.xlu0 0
        %2782 = vperm.xlu0 %2781, %v2779
        %v2783 = vpop.permute.xlu0 %2782
        %v2785 = vlaneseq
        %v2786 = vshrl.u32 %v2785, 7
        %v2787 = vsub.s32 0, %v2786
        %v2788 = vrot.slane %v2783, %v2787
        %v2789 = vadd.f32 %v2739, %v2788
        %v2790 = vadd.f32 %v2752, %v2788
        %v2791 = vadd.f32 %v2765, %v2788
        %v2792 = vadd.f32 %v2778, %v2788
        %v2797 = vcombine.low %v2789, %v2790
        %v2798 = vcombine.low %v2791, %v2792
        %v2800 = vunpack.c.l.s4 1966171168
        %v2801 = vunpack.c.0.s8 %v2800
        %v2802 = vlaneseq
        %v2803 = vshrl.u32 %v2802, 7
        %v2804 = vsub.s32 %v2801, %v2803
        %v2805 = vrot.slane %v2797, %v2804
        %v2807 = vunpack.c.l.s4 1966171168
        %v2808 = vunpack.c.0.s8 %v2807
        %v2809 = vlaneseq
        %v2810 = vshrl.u32 %v2809, 7
        %v2811 = vsub.s32 %v2808, %v2810
        %v2812 = vrot.slane %v2798, %v2811
        %v2813 = vcombine.low %v2805, %v2812
        %v2815 = vunpack.c.l.s4 1966171168
        %v2816 = vunpack.c.0.s8 %v2815
        %v2817 = vlaneseq
        %v2818 = vshrl.u32 %v2817, 7
        %v2819 = vsub.s32 %v2816, %v2818
        %v2820 = vrot.slane %v2813, %v2819
        %v2822 = vlaneseq
        %vm2823 = vcmp.ge.s32.totalorder %v2822, 0
        %vm2824 = vcmp.lt.s32.totalorder %v2822, 512
        %vm2825 = vmand %vm2823, %vm2824
        %2826 = vst.msk [vmem:[%s274] sm:$0xf] %vm2825, %v2820
        %s2827 = sand.u32 %s183, 1
        %s2828 = scalar_lea.sflag [#allocation4], %s2827
        %s2829 = sand.u32 %s183, 1
        %s2830 = smul.addr %s2829, 4
        %s2831 = scalar_lea.vmem [#allocation3], %s2830
        // Predicated region
        $region49: #{tpu_custom_call.1} parent=47 // pred_check
          %p2832 = pneg %p193
        $region50: #{tpu_custom_call.1} parent=47 // pred_check_branch
          %2834 = sbr.rel (%p2832) target = $region52
        $region51: #{tpu_custom_call.1} parent=47 // pred_region
          %s2835 = smul.u32 4, %s23
          %s2837 = ssub.s32 64, 64
          %2838 = vsyncadd %s2828, %s2837
          %s2839 = smul.addr %s2835, 16
          %s2840 = scalar_lea.hbm %s7, %s2839
          %s2842 = sshll.u32 %s2831, 4
          %s2843 = int_to_ptr.vmem [resolvable:$true] %s2842
          %2845 = dma.vmem_to_hbm [thread:$0]  %s2843, 64, %s2840, %s2828
        $region52: #{tpu_custom_call.1} parent=47 // pred_fallthru
          _
      $region48: #{tpu_custom_call.1} parent=5 // pred_fallthru
        _
      %p2846 = scmp.le.s32.totalorder 2, %s18
      // Predicated region
      $region53: #{tpu_custom_call.1} parent=5 // pred_check
        %p2847 = pneg %p2846
      $region54: #{tpu_custom_call.1} parent=5 // pred_check_branch
        %2849 = sbr.rel (%p2847) target = $region56
      $region55: #{tpu_custom_call.1} parent=5 // pred_region
        %s2850 = ssub.s32 %s18, 2
        // Predicated region
        $region57: #{tpu_custom_call.1} parent=55 // pred_check
          %p2851 = pneg %p199
        $region58: #{tpu_custom_call.1} parent=55 // pred_check_branch
          %2853 = sbr.rel (%p2851) target = $region60
        $region59: #{tpu_custom_call.1} parent=55 // pred_region
          %s2854 = sand.u32 %s184, 1
          %s2855 = scalar_lea.sflag [#allocation4], %s2854
          %s2856 = sand.u32 %s184, 1
          %s2857 = smul.addr %s2856, 4
          %s2858 = scalar_lea.vmem [#allocation3], %s2857
          %2859 = dma.done %s2855, 64
        $region60: #{tpu_custom_call.1} parent=55 // pred_fallthru
          _
      $region56: #{tpu_custom_call.1} parent=5 // pred_fallthru
        _
    $region6: #{tpu_custom_call.1} parent=1 // loop_footer
      %s22 = sadd.s32 1, %s18
    $region7: #{tpu_custom_call.1} parent=1 // loop_footer_branch
      %17 = sbr.rel target = $region3
    $region8: #{tpu_custom_call.1} parent=1 // loop_exit
      _
    %2860 = vsyncpa [#allocation4], 1
    %s2861 = scalar_lea.sflag [#allocation4], 1
    %2862 = vsyncpa %s2861, 1

</llo_original>
